<compile_context>
chip_gen: v5e
topology: v5e:2x2
jax: 0.10.0
libtpu: 0.0.40
codegen_flags: <defaults>
</compile_context>

<pallas_src>
import functools
import math

import jax
import jax.numpy as jnp
import numpy as np
from jax.experimental import pallas as pl
from jax.experimental.pallas import tpu as pltpu


def _ccfg_kernel(tlen, vdim, rch,
                 x_ref,      # (nb, C, T*V) float32, native channel-first layout
                 pw_ref,     # (Kp, C+1)  packed [w3|w1|w2] (1/T folded) + bias col
                 suv_ref,    # (2V, V*V)  0/1 selectors (u-major / v-minor columns)
                 hp_ref,     # (Co+1, Co+R+1)  [wfc*bn | w4*alpha/V | b4*alpha ; bfc*bn+bnb]
                 out_ref):   # (1, nb, Co)
    f32 = jnp.float32
    HI = jax.lax.Precision.HIGHEST
    T, V, R = tlen, vdim, rch
    nb, C, _ = x_ref.shape
    Kp = pw_ref.shape[0]
    Co = hp_ref.shape[0] - 1
    Rp = (Kp - Co) // 2                      # R padded up to a multiple of 8

    # ---- time reduction: xm_sum[n,c,v] = sum_t x[n,c,t,v] --------------------
    # x block is lane-dense (T*V lanes); reduce t-groups with static lane slices
    # instead of reshaping (no relayout, x never fully live in vregs).
    xm = x_ref[:, :, 0:V]
    for t in range(1, T):
        xm = xm + x_ref[:, :, t * V:(t + 1) * V]          # (nb, C, V)

    pw = pw_ref[...]
    wcat_t = pw[:, 0:C]                                   # (Kp, C), 1/T folded
    bcat = pw[:, C:C + 1]                                 # (Kp, 1)

    # ---- fused conv1|conv2|conv3 projection (one packed weight) --------------
    projs = []
    for n in range(nb):                                    # nb is small & static
        projs.append(jnp.dot(wcat_t, xm[n], precision=HI,
                             preferred_element_type=f32))  # (Kp, V)
    proj = jnp.stack(projs, axis=0) + bcat                 # (nb, Kp, V)

    x3m = proj[:, 0:Co, :]                                 # (nb, Co, V) = mean_T(conv3)
    # Rp is a multiple of 8 -> these slices/reshapes are sublane-tile aligned.
    x1p = proj[:, Co:Co + Rp, :].reshape(nb * Rp, V)       # rows (n,r), lanes u
    x2p = proj[:, Co + Rp:Co + 2 * Rp, :].reshape(nb * Rp, V)  # rows (n,r), lanes v

    # ---- pairwise tanh block, lane-dense (nb*Rp, V*V) -------------------------
    # column idx = u*V + v.  s1 repeats x1 over v-blocks, s2 tiles x2 over u-blocks.
    suv = suv_ref[...]
    s1 = suv[0:V, :]
    s2 = suv[V:2 * V, :]
    d = (jnp.dot(x1p, s1, precision=HI, preferred_element_type=f32)
         - jnp.dot(x2p, s2, precision=HI, preferred_element_type=f32))
    tn = jnp.tanh(d)                                       # (nb*Rp, V*V), dense lanes
    # Asum[n,v,r] = sum_u tanh(x1[n,u,r] - x2[n,v,r]) : contiguous lane-slice adds.
    asum2 = tn[:, 0:V]
    for u in range(1, V):
        asum2 = asum2 + tn[:, u * V:(u + 1) * V]
    asum = asum2.reshape(nb, Rp, V)                        # pad rows are exactly 0

    hp = hp_ref[...]
    wfce = hp[0:Co, 0:Co]                                  # fc weight * bn scale
    w4e = hp[0:Co, Co:Co + R]                              # (Co, R), alpha/V folded
    b4e = hp[0:Co, Co + R:Co + R + 1]                      # (Co, 1), alpha folded
    bfce = hp[Co:Co + 1, 0:Co]                             # (1, Co) fc bias (+bn)

    # ---- conv4 on the VPU (R broadcast-FMAs), then the factored pool ---------
    a1s = w4e[:, 0:1] * asum[:, 0:1, :]                    # (nb, Co, V)
    for r in range(1, R):
        a1s = a1s + w4e[:, r:r + 1] * asum[:, r:r + 1, :]
    a1s = a1s + b4e
    # pool[n,c] = sum_v [(alpha/V)*(Asum@w4) + alpha*b4] * mean_T(conv3)[n,c,v]
    pool = jnp.sum(a1s * x3m, axis=2)                      # (nb, Co)

    # ---- class_linear: Dropout(0)=id -> Linear -> BatchNorm1d(eval) -> ReLU --
    y = jnp.dot(pool, wfce, precision=HI, preferred_element_type=f32) + bfce
    y = jnp.maximum(y, 0.0)
    out_ref[0] = y.astype(out_ref.dtype)


def _pick_nb(n, batch_block):
    """Largest divisor of N that is <= batch_block (no batch padding needed)."""
    cap = max(1, min(n, batch_block))
    for nb in range(cap, 0, -1):
        if n % nb == 0:
            return nb
    return 1


def _pack_params(p, tlen, vdim, alpha):
    f32 = jnp.float32
    C, R = p["w1"].shape
    Co = p["w3"].shape[1]
    Rp = ((R + 7) // 8) * 8
    Kp = Co + 2 * Rp

    # projpack: rows [0:Co]=w3^T, [Co:Co+R]=w1^T, [Co+Rp:Co+Rp+R]=w2^T (zero pad
    # in between), all scaled by 1/T; last column holds the biases.
    projpack = jnp.zeros((Kp, C + 1), f32)
    projpack = projpack.at[0:Co, 0:C].set(p["w3"].T.astype(f32) / tlen)
    projpack = projpack.at[0:Co, C].set(p["b3"].reshape(-1).astype(f32))
    projpack = projpack.at[Co:Co + R, 0:C].set(p["w1"].T.astype(f32) / tlen)
    projpack = projpack.at[Co:Co + R, C].set(p["b1"].reshape(-1).astype(f32))
    projpack = projpack.at[Co + Rp:Co + Rp + R, 0:C].set(p["w2"].T.astype(f32) / tlen)
    projpack = projpack.at[Co + Rp:Co + Rp + R, C].set(p["b2"].reshape(-1).astype(f32))

    # 0/1 selectors, columns ordered u-major / v-minor (idx = u*V + v).
    V = vdim
    col_u = np.repeat(np.arange(V), V)
    col_v = np.tile(np.arange(V), V)
    rows = np.arange(V)[:, None]
    s1 = (rows == col_u[None, :]).astype(np.float32)   # repeats x1 over v blocks
    s2 = (rows == col_v[None, :]).astype(np.float32)   # tiles x2 over u blocks
    suv = jnp.asarray(np.concatenate([s1, s2], axis=0))            # (2V, V*V)

    # head pack: fc weight with eval-BN folded, conv4 weight/bias with alpha and
    # the 1/V pool factor folded, fc bias (+BN bias) in the extra row.
    bn_s = p["bn_scale"].reshape(-1).astype(f32)
    bn_b = p["bn_bias"].reshape(-1).astype(f32)
    wfce = p["wfc"].astype(f32) * bn_s[None, :]                     # (Co, Co)
    bfce = p["bfc"].reshape(-1).astype(f32) * bn_s + bn_b           # (Co,)
    w4e = p["w4"].T.astype(f32) * (float(alpha) / V)                # (Co, R)
    b4e = p["b4"].reshape(-1).astype(f32) * float(alpha)            # (Co,)
    hpack = jnp.zeros((Co + 1, Co + R + 1), f32)
    hpack = hpack.at[0:Co, 0:Co].set(wfce)
    hpack = hpack.at[0:Co, Co:Co + R].set(w4e)
    hpack = hpack.at[0:Co, Co + R].set(b4e)
    hpack = hpack.at[Co, 0:Co].set(bfce)
    return projpack, suv, hpack


def ccfg_forward(x_nctv, params, num_classes, alpha=1.0, batch_block=16):
    """x_nctv: (N, C_in, T, V) float32 -- same layout as the PyTorch module."""
    x = jnp.asarray(x_nctv, jnp.float32)
    N, C, T, V = x.shape
    Co = params["w3"].shape[1]
    R = params["w1"].shape[1]
    assert Co == params["wfc"].shape[0], "class_linear requires out_channels == in_channels"

    # Native layout, contiguous (free) reshape -> lane-dense (T*V) trailing dim.
    x = x.reshape(N, C, T * V)

    nb = _pick_nb(N, batch_block)
    grid_n = N // nb

    projpack, suv, hpack = _pack_params(params, T, V, alpha)

    kernel = functools.partial(_ccfg_kernel, T, V, R)
    y = pl.pallas_call(
        kernel,
        out_shape=jax.ShapeDtypeStruct((grid_n, nb, Co), jnp.float32),
        grid=(grid_n,),
        in_specs=[
            pl.BlockSpec((nb, C, T * V), lambda g: (g, 0, 0)),
            pl.BlockSpec(projpack.shape, lambda g: (0, 0)),
            pl.BlockSpec(suv.shape, lambda g: (0, 0)),
            pl.BlockSpec(hpack.shape, lambda g: (0, 0)),
        ],
        out_specs=pl.BlockSpec((1, nb, Co), lambda g: (g, 0, 0)),
        compiler_params=pltpu.CompilerParams(dimension_semantics=("parallel",)),
    )(x, projpack, suv, hpack)

    y = y.reshape(N, Co)
    # Every class head is the same parameter-free pool + shared LinearBlock.
    return jnp.broadcast_to(y[:, None, :], (N, num_classes, Co))


def init_ccfg_params(key, in_channels, out_channels, rel_reduction=8, mid_reduction=1):
    """Deterministic synthetic init mirroring the PyTorch module's __init__."""
    if in_channels in (3, 9):
        rel_channels = 8
    else:
        rel_channels = in_channels // rel_reduction
    C, R, Co = in_channels, rel_channels, out_channels
    k = jax.random.split(key, 6)

    def kaiming_out(kk, cin, cout):  # kaiming_normal_(fan_out) for a 1x1 conv, stored (in, out)
        return math.sqrt(2.0 / cout) * jax.random.normal(kk, (cin, cout), jnp.float32)

    params = {
        "w1": kaiming_out(k[0], C, R),  "b1": jnp.zeros((1, R), jnp.float32),
        "w2": kaiming_out(k[1], C, R),  "b2": jnp.zeros((1, R), jnp.float32),
        "w3": kaiming_out(k[2], C, Co), "b3": jnp.zeros((1, Co), jnp.float32),
        "w4": kaiming_out(k[3], R, Co), "b4": jnp.zeros((1, Co), jnp.float32),
        "wfc": math.sqrt(2.0 / C) * jax.random.normal(k[4], (C, C), jnp.float32),
        "bfc": jax.random.uniform(k[5], (1, C), jnp.float32,
                                  -1.0 / math.sqrt(C), 1.0 / math.sqrt(C)),
    }
    # BatchNorm1d eval-mode with default stats (gamma=1, beta=0, mean=0, var=1, eps=1e-5)
    eps = 1e-5
    params["bn_scale"] = jnp.full((1, C), 1.0 / math.sqrt(1.0 + eps), jnp.float32)
    params["bn_bias"] = jnp.zeros((1, C), jnp.float32)
    # TODO(synk): training-mode BatchNorm1d (batch statistics) and nonzero Dropout are
    # not modeled; eval-mode inference semantics are implemented.
    return params


def ccfg_reference(x_nctv, p, num_classes, alpha=1.0):
    """Pure-JAX reference (full un-factored path) for numerical validation."""
    x = jnp.transpose(x_nctv, (0, 2, 3, 1)).astype(jnp.float32)      # (N, T, V, C)
    hp = jax.lax.Precision.HIGHEST
    x1 = (jnp.einsum("ntvc,cr->ntvr", x, p["w1"], precision=hp) + p["b1"]).mean(axis=1)
    x2 = (jnp.einsum("ntvc,cr->ntvr", x, p["w2"], precision=hp) + p["b2"]).mean(axis=1)
    A = jnp.tanh(x1[:, :, None, :] - x2[:, None, :, :])              # (N, U, V, R)
    A1 = (jnp.einsum("nuvr,ro->nuvo", A, p["w4"], precision=hp) + p["b4"]) * alpha
    x3 = jnp.einsum("ntvc,co->ntvo", x, p["w3"], precision=hp) + p["b3"]
    e = jnp.einsum("nuvo,ntvo->ntuo", A1, x3, precision=hp)          # (N, T, U, Co)
    pool = e.mean(axis=(1, 2))                                       # (N, Co)
    y = jnp.dot(pool, p["wfc"], precision=hp) + p["bfc"]
    y = jnp.maximum(y * p["bn_scale"] + p["bn_bias"], 0.0)
    return jnp.repeat(y[:, None, :], num_classes, axis=1)


if __name__ == "__main__":
    NUM_CLASSES = 4
    IN_CH = 32
    OUT_CH = 32          # class_linear = Linear(in_channels, in_channels) => out == in
    N, T, V = 2, 8, 16

    key = jax.random.PRNGKey(0)
    kx, kp = jax.random.split(key)
    params = init_ccfg_params(kp, IN_CH, OUT_CH)
    x = jax.random.normal(kx, (N, IN_CH, T, V), jnp.float32)   # torch NCHW: (N, C_in, T, V)

    out = ccfg_forward(x, params, NUM_CLASSES, alpha=1.0)
    out = jax.block_until_ready(out)

    ref = ccfg_reference(x, params, NUM_CLASSES, alpha=1.0)
    np.testing.assert_allclose(np.asarray(out), np.asarray(ref), rtol=1e-2, atol=1e-3)
    assert out.shape == (N, NUM_CLASSES, IN_CH)
    print("KERNEL_OK")
</pallas_src>

<mosaic_0001>
module attributes {stable_mosaic.version = 11 : i64} {
  func.func @_ccfg_kernel(%arg0: i32, %arg1: memref<2x32x128xf32, #tpu.memory_space<vmem>>, %arg2: memref<48x33xf32, #tpu.memory_space<vmem>>, %arg3: memref<32x256xf32, #tpu.memory_space<vmem>>, %arg4: memref<33x37xf32, #tpu.memory_space<vmem>>, %arg5: memref<1x2x32xf32, #tpu.memory_space<vmem>>) attributes {dimension_semantics = [#tpu.dimension_semantics<parallel>], iteration_bounds = array<i64: 1>, scalar_prefetch = 0 : i64, scratch_operands = 0 : i64, tpu.core_type = #tpu.core_type<tc>, window_params = [{transform_indices = @transform_0, window_bounds = array<i64: 2, 32, 128>}, {pipeline_mode = #tpu.pipeline_mode<synchronous>, transform_indices = @transform_1, window_bounds = array<i64: 48, 33>}, {pipeline_mode = #tpu.pipeline_mode<synchronous>, transform_indices = @transform_2, window_bounds = array<i64: 32, 256>}, {pipeline_mode = #tpu.pipeline_mode<synchronous>, transform_indices = @transform_3, window_bounds = array<i64: 33, 37>}, {transform_indices = @transform_4, window_bounds = array<i64: 1, 2, 32>}]} {
    %c0 = arith.constant 0 : index
    %c0_0 = arith.constant 0 : index
    %c0_1 = arith.constant 0 : index
    %0 = vector.load %arg1[%c0, %c0_0, %c0_1] : memref<2x32x128xf32, #tpu.memory_space<vmem>>, vector<2x32x16xf32>
    %c0_2 = arith.constant 0 : index
    %c0_3 = arith.constant 0 : index
    %c16 = arith.constant 16 : index
    %1 = vector.load %arg1[%c0_2, %c0_3, %c16] : memref<2x32x128xf32, #tpu.memory_space<vmem>>, vector<2x32x16xf32>
    %2 = arith.addf %0, %1 : vector<2x32x16xf32>
    %c0_4 = arith.constant 0 : index
    %c0_5 = arith.constant 0 : index
    %c32 = arith.constant 32 : index
    %3 = vector.load %arg1[%c0_4, %c0_5, %c32] : memref<2x32x128xf32, #tpu.memory_space<vmem>>, vector<2x32x16xf32>
    %4 = arith.addf %2, %3 : vector<2x32x16xf32>
    %c0_6 = arith.constant 0 : index
    %c0_7 = arith.constant 0 : index
    %c48 = arith.constant 48 : index
    %5 = vector.load %arg1[%c0_6, %c0_7, %c48] : memref<2x32x128xf32, #tpu.memory_space<vmem>>, vector<2x32x16xf32>
    %6 = arith.addf %4, %5 : vector<2x32x16xf32>
    %c0_8 = arith.constant 0 : index
    %c0_9 = arith.constant 0 : index
    %c64 = arith.constant 64 : index
    %7 = vector.load %arg1[%c0_8, %c0_9, %c64] : memref<2x32x128xf32, #tpu.memory_space<vmem>>, vector<2x32x16xf32>
    %8 = arith.addf %6, %7 : vector<2x32x16xf32>
    %c0_10 = arith.constant 0 : index
    %c0_11 = arith.constant 0 : index
    %c80 = arith.constant 80 : index
    %9 = vector.load %arg1[%c0_10, %c0_11, %c80] : memref<2x32x128xf32, #tpu.memory_space<vmem>>, vector<2x32x16xf32>
    %10 = arith.addf %8, %9 : vector<2x32x16xf32>
    %c0_12 = arith.constant 0 : index
    %c0_13 = arith.constant 0 : index
    %c96 = arith.constant 96 : index
    %11 = vector.load %arg1[%c0_12, %c0_13, %c96] : memref<2x32x128xf32, #tpu.memory_space<vmem>>, vector<2x32x16xf32>
    %12 = arith.addf %10, %11 : vector<2x32x16xf32>
    %c0_14 = arith.constant 0 : index
    %c0_15 = arith.constant 0 : index
    %c112 = arith.constant 112 : index
    %13 = vector.load %arg1[%c0_14, %c0_15, %c112] : memref<2x32x128xf32, #tpu.memory_space<vmem>>, vector<2x32x16xf32>
    %14 = arith.addf %12, %13 : vector<2x32x16xf32>
    %c0_16 = arith.constant 0 : index
    %c0_17 = arith.constant 0 : index
    %15 = vector.load %arg2[%c0_16, %c0_17] : memref<48x33xf32, #tpu.memory_space<vmem>>, vector<48x33xf32>
    %16 = vector.extract_strided_slice %15 {offsets = [0, 0], sizes = [48, 32], strides = [1, 1]} : vector<48x33xf32> to vector<48x32xf32>
    %17 = vector.extract_strided_slice %15 {offsets = [0, 32], sizes = [48, 1], strides = [1, 1]} : vector<48x33xf32> to vector<48x1xf32>
    %18 = vector.extract_strided_slice %14 {offsets = [0, 0, 0], sizes = [1, 32, 16], strides = [1, 1, 1]} : vector<2x32x16xf32> to vector<1x32x16xf32>
    %19 = vector.shape_cast %18 : vector<1x32x16xf32> to vector<32x16xf32>
    %cst = arith.constant dense<0.000000e+00> : vector<48x16xf32>
    %20 = tpu.matmul %16, %19, %cst {dimension_numbers = #tpu.dot_dimension_numbers<[1], [0], [0], [1], [0, 0, 1, 1], [], []>, precision = #tpu.contract_precision<fp32>} : vector<48x32xf32>, vector<32x16xf32>, vector<48x16xf32> -> vector<48x16xf32>
    %21 = vector.extract_strided_slice %14 {offsets = [1, 0, 0], sizes = [1, 32, 16], strides = [1, 1, 1]} : vector<2x32x16xf32> to vector<1x32x16xf32>
    %22 = vector.shape_cast %21 : vector<1x32x16xf32> to vector<32x16xf32>
    %cst_18 = arith.constant dense<0.000000e+00> : vector<48x16xf32>
    %23 = tpu.matmul %16, %22, %cst_18 {dimension_numbers = #tpu.dot_dimension_numbers<[1], [0], [0], [1], [0, 0, 1, 1], [], []>, precision = #tpu.contract_precision<fp32>} : vector<48x32xf32>, vector<32x16xf32>, vector<48x16xf32> -> vector<48x16xf32>
    %24 = vector.shape_cast %20 : vector<48x16xf32> to vector<1x48x16xf32>
    %25 = vector.shape_cast %23 : vector<48x16xf32> to vector<1x48x16xf32>
    %26 = tpu.concatenate %24, %25 in 0 : vector<1x48x16xf32>, vector<1x48x16xf32> -> vector<2x48x16xf32>
    %27 = vector.shape_cast %17 : vector<48x1xf32> to vector<1x48x1xf32>
    %28 = vector.broadcast %27 : vector<1x48x1xf32> to vector<2x48x16xf32>
    %29 = arith.addf %26, %28 : vector<2x48x16xf32>
    %30 = vector.extract_strided_slice %29 {offsets = [0, 0, 0], sizes = [2, 32, 16], strides = [1, 1, 1]} : vector<2x48x16xf32> to vector<2x32x16xf32>
    %31 = vector.extract_strided_slice %29 {offsets = [0, 32, 0], sizes = [2, 8, 16], strides = [1, 1, 1]} : vector<2x48x16xf32> to vector<2x8x16xf32>
    %32 = vector.shape_cast %31 : vector<2x8x16xf32> to vector<16x16xf32>
    %33 = vector.extract_strided_slice %29 {offsets = [0, 40, 0], sizes = [2, 8, 16], strides = [1, 1, 1]} : vector<2x48x16xf32> to vector<2x8x16xf32>
    %34 = vector.shape_cast %33 : vector<2x8x16xf32> to vector<16x16xf32>
    %c0_19 = arith.constant 0 : index
    %c0_20 = arith.constant 0 : index
    %35 = vector.load %arg3[%c0_19, %c0_20] : memref<32x256xf32, #tpu.memory_space<vmem>>, vector<32x256xf32>
    %36 = vector.extract_strided_slice %35 {offsets = [0, 0], sizes = [16, 256], strides = [1, 1]} : vector<32x256xf32> to vector<16x256xf32>
    %37 = vector.extract_strided_slice %35 {offsets = [16, 0], sizes = [16, 256], strides = [1, 1]} : vector<32x256xf32> to vector<16x256xf32>
    %cst_21 = arith.constant dense<0.000000e+00> : vector<16x256xf32>
    %38 = tpu.matmul %32, %36, %cst_21 {dimension_numbers = #tpu.dot_dimension_numbers<[1], [0], [0], [1], [0, 0, 1, 1], [], []>, precision = #tpu.contract_precision<fp32>} : vector<16x16xf32>, vector<16x256xf32>, vector<16x256xf32> -> vector<16x256xf32>
    %cst_22 = arith.constant dense<0.000000e+00> : vector<16x256xf32>
    %39 = tpu.matmul %34, %37, %cst_22 {dimension_numbers = #tpu.dot_dimension_numbers<[1], [0], [0], [1], [0, 0, 1, 1], [], []>, precision = #tpu.contract_precision<fp32>} : vector<16x16xf32>, vector<16x256xf32>, vector<16x256xf32> -> vector<16x256xf32>
    %40 = arith.subf %38, %39 : vector<16x256xf32>
    %41 = math.tanh %40 : vector<16x256xf32>
    %42 = vector.extract_strided_slice %41 {offsets = [0, 0], sizes = [16, 16], strides = [1, 1]} : vector<16x256xf32> to vector<16x16xf32>
    %43 = vector.extract_strided_slice %41 {offsets = [0, 16], sizes = [16, 16], strides = [1, 1]} : vector<16x256xf32> to vector<16x16xf32>
    %44 = arith.addf %42, %43 : vector<16x16xf32>
    %45 = vector.extract_strided_slice %41 {offsets = [0, 32], sizes = [16, 16], strides = [1, 1]} : vector<16x256xf32> to vector<16x16xf32>
    %46 = arith.addf %44, %45 : vector<16x16xf32>
    %47 = vector.extract_strided_slice %41 {offsets = [0, 48], sizes = [16, 16], strides = [1, 1]} : vector<16x256xf32> to vector<16x16xf32>
    %48 = arith.addf %46, %47 : vector<16x16xf32>
    %49 = vector.extract_strided_slice %41 {offsets = [0, 64], sizes = [16, 16], strides = [1, 1]} : vector<16x256xf32> to vector<16x16xf32>
    %50 = arith.addf %48, %49 : vector<16x16xf32>
    %51 = vector.extract_strided_slice %41 {offsets = [0, 80], sizes = [16, 16], strides = [1, 1]} : vector<16x256xf32> to vector<16x16xf32>
    %52 = arith.addf %50, %51 : vector<16x16xf32>
    %53 = vector.extract_strided_slice %41 {offsets = [0, 96], sizes = [16, 16], strides = [1, 1]} : vector<16x256xf32> to vector<16x16xf32>
    %54 = arith.addf %52, %53 : vector<16x16xf32>
    %55 = vector.extract_strided_slice %41 {offsets = [0, 112], sizes = [16, 16], strides = [1, 1]} : vector<16x256xf32> to vector<16x16xf32>
    %56 = arith.addf %54, %55 : vector<16x16xf32>
    %57 = vector.extract_strided_slice %41 {offsets = [0, 128], sizes = [16, 16], strides = [1, 1]} : vector<16x256xf32> to vector<16x16xf32>
    %58 = arith.addf %56, %57 : vector<16x16xf32>
    %59 = vector.extract_strided_slice %41 {offsets = [0, 144], sizes = [16, 16], strides = [1, 1]} : vector<16x256xf32> to vector<16x16xf32>
    %60 = arith.addf %58, %59 : vector<16x16xf32>
    %61 = vector.extract_strided_slice %41 {offsets = [0, 160], sizes = [16, 16], strides = [1, 1]} : vector<16x256xf32> to vector<16x16xf32>
    %62 = arith.addf %60, %61 : vector<16x16xf32>
    %63 = vector.extract_strided_slice %41 {offsets = [0, 176], sizes = [16, 16], strides = [1, 1]} : vector<16x256xf32> to vector<16x16xf32>
    %64 = arith.addf %62, %63 : vector<16x16xf32>
    %65 = vector.extract_strided_slice %41 {offsets = [0, 192], sizes = [16, 16], strides = [1, 1]} : vector<16x256xf32> to vector<16x16xf32>
    %66 = arith.addf %64, %65 : vector<16x16xf32>
    %67 = vector.extract_strided_slice %41 {offsets = [0, 208], sizes = [16, 16], strides = [1, 1]} : vector<16x256xf32> to vector<16x16xf32>
    %68 = arith.addf %66, %67 : vector<16x16xf32>
    %69 = vector.extract_strided_slice %41 {offsets = [0, 224], sizes = [16, 16], strides = [1, 1]} : vector<16x256xf32> to vector<16x16xf32>
    %70 = arith.addf %68, %69 : vector<16x16xf32>
    %71 = vector.extract_strided_slice %41 {offsets = [0, 240], sizes = [16, 16], strides = [1, 1]} : vector<16x256xf32> to vector<16x16xf32>
    %72 = arith.addf %70, %71 : vector<16x16xf32>
    %73 = vector.shape_cast %72 : vector<16x16xf32> to vector<2x8x16xf32>
    %c0_23 = arith.constant 0 : index
    %c0_24 = arith.constant 0 : index
    %74 = vector.load %arg4[%c0_23, %c0_24] : memref<33x37xf32, #tpu.memory_space<vmem>>, vector<33x37xf32>
    %75 = vector.extract_strided_slice %74 {offsets = [0, 0], sizes = [32, 32], strides = [1, 1]} : vector<33x37xf32> to vector<32x32xf32>
    %76 = vector.extract_strided_slice %74 {offsets = [0, 32], sizes = [32, 4], strides = [1, 1]} : vector<33x37xf32> to vector<32x4xf32>
    %77 = vector.extract_strided_slice %74 {offsets = [0, 36], sizes = [32, 1], strides = [1, 1]} : vector<33x37xf32> to vector<32x1xf32>
    %78 = vector.extract_strided_slice %74 {offsets = [32, 0], sizes = [1, 32], strides = [1, 1]} : vector<33x37xf32> to vector<1x32xf32>
    %79 = vector.extract_strided_slice %76 {offsets = [0, 0], sizes = [32, 1], strides = [1, 1]} : vector<32x4xf32> to vector<32x1xf32>
    %80 = vector.extract_strided_slice %73 {offsets = [0, 0, 0], sizes = [2, 1, 16], strides = [1, 1, 1]} : vector<2x8x16xf32> to vector<2x1x16xf32>
    %81 = vector.shape_cast %79 : vector<32x1xf32> to vector<1x32x1xf32>
    %82 = vector.broadcast %81 : vector<1x32x1xf32> to vector<2x32x16xf32>
    %83 = vector.broadcast %80 : vector<2x1x16xf32> to vector<2x32x16xf32>
    %84 = arith.mulf %82, %83 : vector<2x32x16xf32>
    %85 = vector.extract_strided_slice %76 {offsets = [0, 1], sizes = [32, 1], strides = [1, 1]} : vector<32x4xf32> to vector<32x1xf32>
    %86 = vector.extract_strided_slice %73 {offsets = [0, 1, 0], sizes = [2, 1, 16], strides = [1, 1, 1]} : vector<2x8x16xf32> to vector<2x1x16xf32>
    %87 = vector.shape_cast %85 : vector<32x1xf32> to vector<1x32x1xf32>
    %88 = vector.broadcast %87 : vector<1x32x1xf32> to vector<2x32x16xf32>
    %89 = vector.broadcast %86 : vector<2x1x16xf32> to vector<2x32x16xf32>
    %90 = arith.mulf %88, %89 : vector<2x32x16xf32>
    %91 = arith.addf %84, %90 : vector<2x32x16xf32>
    %92 = vector.extract_strided_slice %76 {offsets = [0, 2], sizes = [32, 1], strides = [1, 1]} : vector<32x4xf32> to vector<32x1xf32>
    %93 = vector.extract_strided_slice %73 {offsets = [0, 2, 0], sizes = [2, 1, 16], strides = [1, 1, 1]} : vector<2x8x16xf32> to vector<2x1x16xf32>
    %94 = vector.shape_cast %92 : vector<32x1xf32> to vector<1x32x1xf32>
    %95 = vector.broadcast %94 : vector<1x32x1xf32> to vector<2x32x16xf32>
    %96 = vector.broadcast %93 : vector<2x1x16xf32> to vector<2x32x16xf32>
    %97 = arith.mulf %95, %96 : vector<2x32x16xf32>
    %98 = arith.addf %91, %97 : vector<2x32x16xf32>
    %99 = vector.extract_strided_slice %76 {offsets = [0, 3], sizes = [32, 1], strides = [1, 1]} : vector<32x4xf32> to vector<32x1xf32>
    %100 = vector.extract_strided_slice %73 {offsets = [0, 3, 0], sizes = [2, 1, 16], strides = [1, 1, 1]} : vector<2x8x16xf32> to vector<2x1x16xf32>
    %101 = vector.shape_cast %99 : vector<32x1xf32> to vector<1x32x1xf32>
    %102 = vector.broadcast %101 : vector<1x32x1xf32> to vector<2x32x16xf32>
    %103 = vector.broadcast %100 : vector<2x1x16xf32> to vector<2x32x16xf32>
    %104 = arith.mulf %102, %103 : vector<2x32x16xf32>
    %105 = arith.addf %98, %104 : vector<2x32x16xf32>
    %106 = vector.shape_cast %77 : vector<32x1xf32> to vector<1x32x1xf32>
    %107 = vector.broadcast %106 : vector<1x32x1xf32> to vector<2x32x16xf32>
    %108 = arith.addf %105, %107 : vector<2x32x16xf32>
    %109 = arith.mulf %108, %30 : vector<2x32x16xf32>
    %cst_25 = arith.constant dense<0.000000e+00> : vector<2x32xf32>
    %110 = vector.multi_reduction <add>, %109, %cst_25 [2] : vector<2x32x16xf32> to vector<2x32xf32>
    %cst_26 = arith.constant dense<0.000000e+00> : vector<2x32xf32>
    %111 = tpu.matmul %110, %75, %cst_26 {dimension_numbers = #tpu.dot_dimension_numbers<[1], [0], [0], [1], [0, 0, 1, 1], [], []>, precision = #tpu.contract_precision<fp32>} : vector<2x32xf32>, vector<32x32xf32>, vector<2x32xf32> -> vector<2x32xf32>
    %112 = vector.broadcast %78 : vector<1x32xf32> to vector<2x32xf32>
    %113 = arith.addf %111, %112 : vector<2x32xf32>
    %cst_27 = arith.constant 0.000000e+00 : f32
    %114 = vector.broadcast %cst_27 : f32 to vector<2x32xf32>
    %115 = arith.maximumf %113, %114 : vector<2x32xf32>
    %c0_28 = arith.constant 0 : index
    %c0_29 = arith.constant 0 : index
    %c0_30 = arith.constant 0 : index
    %116 = vector.load %arg5[%c0_28, %c0_29, %c0_30] : memref<1x2x32xf32, #tpu.memory_space<vmem>>, vector<1x2x32xf32>
    %117 = vector.shape_cast %116 : vector<1x2x32xf32> to vector<2x32xf32>
    %118 = vector.shape_cast %115 : vector<2x32xf32> to vector<1x2x32xf32>
    tpu.vector_store %arg5[%c0_28, %c0_29, %c0_30], %118 {strides = array<i32>} : memref<1x2x32xf32, #tpu.memory_space<vmem>>, vector<1x2x32xf32>,
    return
  }
  func.func @transform_0(%arg0: i32) -> (i32, i32, i32) {
    %c0_i32 = arith.constant 0 : i32
    %c0_i32_0 = arith.constant 0 : i32
    %c0_i32_1 = arith.constant 0 : i32
    return %arg0, %c0_i32, %c0_i32_0 : i32, i32, i32
  }
  func.func @transform_1(%arg0: i32) -> (i32, i32) {
    %c0_i32 = arith.constant 0 : i32
    %c0_i32_0 = arith.constant 0 : i32
    %c0_i32_1 = arith.constant 0 : i32
    return %c0_i32, %c0_i32_0 : i32, i32
  }
  func.func @transform_2(%arg0: i32) -> (i32, i32) {
    %c0_i32 = arith.constant 0 : i32
    %c0_i32_0 = arith.constant 0 : i32
    %c0_i32_1 = arith.constant 0 : i32
    return %c0_i32, %c0_i32_0 : i32, i32
  }
  func.func @transform_3(%arg0: i32) -> (i32, i32) {
    %c0_i32 = arith.constant 0 : i32
    %c0_i32_0 = arith.constant 0 : i32
    %c0_i32_1 = arith.constant 0 : i32
    return %c0_i32, %c0_i32_0 : i32, i32
  }
  func.func @transform_4(%arg0: i32) -> (i32, i32, i32) {
    %c0_i32 = arith.constant 0 : i32
    %c0_i32_0 = arith.constant 0 : i32
    %c0_i32_1 = arith.constant 0 : i32
    return %arg0, %c0_i32, %c0_i32_0 : i32, i32, i32
  }
}

</mosaic_0001>

<llo_original>
// kernel: tpu_custom_call.1
$region0: #{tpu_custom_call.1}
  #allocation0 [shape = 'u32[]', space=smem, size = 0x4, offset = 0x4, fixed_abs, tag = 'smem constant byte address 0x4 - core index']
  #allocation1 [shape = 'u32[72,128]{1,0:T(1,128)}', space=vmem, size = 0x9000, scoped, tag = 'internal scratch']
  %s0 = inlined_call_operand.vmem [shape: f32[2,32,128], index: 0, kind: input, shape index: {}]
  %s1 = inlined_call_operand.vmem [shape: f32[48,33], index: 1, kind: input, shape index: {}]
  %s2 = inlined_call_operand.hbm [shape: f32[32,256], index: 2, kind: input, shape index: {}]
  %s3 = inlined_call_operand.hbm [shape: f32[33,37], index: 3, kind: input, shape index: {}]
  %s4 = inlined_call_operand.hbm [shape: f32[1,2,32], index: 4, kind: output, shape index: {}]
  %s5 = sld [smem:[#allocation0]]
  $region34: #{tpu_custom_call.1} parent=0
    _
  %s7 = ssub.s32 1, %s5
  %s8 = scalar_select 0, %s7, %s5
  $region1: #{tpu_custom_call.1} parent=0
    #allocation2 [shape = 'u8[32768]{0}', space=vmem, size = 0x8000, scoped, tag = 'input window, operand 2, single buffered']
    #allocation3 [shape = 's32[1]{0}', space=sflag, size = 0x4, scoped, tag = 'scoped memory for tpu_custom_call.1']
    #allocation4 [shape = 's32[1]{0}', space=sflag, size = 0x4, scoped, tag = 'scoped memory for tpu_custom_call.1']
    #allocation5 [shape = 'u8[20480]{0}', space=vmem, size = 0x5000, scoped, tag = 'input window, operand 3, single buffered']
    #allocation6 [shape = 's32[1]{0}', space=sflag, size = 0x4, scoped, tag = 'scoped memory for tpu_custom_call.1']
    #allocation7 [shape = 'u8[1024]{0}', space=vmem, size = 0x400, scoped, tag = 'output window, operand 0, single buffered']
    %9 = vsyncpa [#allocation3], 0
    %10 = vsyncpa [#allocation6], 0
    %11 = vsyncpa [#allocation4], 0
    // Predicated region
    $region2: #{tpu_custom_call.1} parent=1 // pred_check
      _
    $region3: #{tpu_custom_call.1} parent=1 // pred_check_branch
      %13 = sbr.rel (0) target = $region5
    $region4: #{tpu_custom_call.1} parent=1 // pred_region
      _
    $region5: #{tpu_custom_call.1} parent=1 // pred_fallthru
      _
    // Predicated region
    $region6: #{tpu_custom_call.1} parent=1 // pred_check
      _
    $region7: #{tpu_custom_call.1} parent=1 // pred_check_branch
      %15 = sbr.rel (0) target = $region9
    $region8: #{tpu_custom_call.1} parent=1 // pred_region
      _
    $region9: #{tpu_custom_call.1} parent=1 // pred_fallthru
      _
    // Predicated region
    $region10: #{tpu_custom_call.1} parent=1 // pred_check
      _
    $region11: #{tpu_custom_call.1} parent=1 // pred_check_branch
      %17 = sbr.rel (0) target = $region13
    $region12: #{tpu_custom_call.1} parent=1 // pred_region
      %19 = vsyncadd [#allocation3], 0
      %s20 = sshll.u32 %s2, 4
      %s21 = int_to_ptr.hbm [resolvable:$true] %s20
      %s22 = sshll.u32 [#allocation2], 4
      %s23 = int_to_ptr.vmem [resolvable:$true] %s22
      %28 = dma.hbm_to_vmem [thread:$0]  %s21, 1024, %s23, [#allocation3], 256, 256, 16
    $region13: #{tpu_custom_call.1} parent=1 // pred_fallthru
      _
    // Predicated region
    $region14: #{tpu_custom_call.1} parent=1 // pred_check
      _
    $region15: #{tpu_custom_call.1} parent=1 // pred_check_branch
      %30 = sbr.rel (0) target = $region17
    $region16: #{tpu_custom_call.1} parent=1 // pred_region
      %32 = vsyncadd [#allocation6], 0
      %s33 = sshll.u32 %s3, 4
      %s34 = int_to_ptr.hbm [resolvable:$true] %s33
      %s35 = sshll.u32 [#allocation5], 4
      %s36 = int_to_ptr.vmem [resolvable:$true] %s35
      %41 = dma.hbm_to_vmem [thread:$0]  %s34, 640, %s36, [#allocation6], 128, 128, 8
    $region17: #{tpu_custom_call.1} parent=1 // pred_fallthru
      _
    // Predicated region
    $region18: #{tpu_custom_call.1} parent=1 // pred_check
      _
    $region19: #{tpu_custom_call.1} parent=1 // pred_check_branch
      %43 = sbr.rel (0) target = $region21
    $region20: #{tpu_custom_call.1} parent=1 // pred_region
      %45 = dma.done [#allocation3], 1024
    $region21: #{tpu_custom_call.1} parent=1 // pred_fallthru
      _
    // Predicated region
    $region22: #{tpu_custom_call.1} parent=1 // pred_check
      _
    $region23: #{tpu_custom_call.1} parent=1 // pred_check_branch
      %47 = sbr.rel (0) target = $region25
    $region24: #{tpu_custom_call.1} parent=1 // pred_region
      %49 = dma.done [#allocation6], 640
    $region25: #{tpu_custom_call.1} parent=1 // pred_fallthru
      _
    %v50 = vld [vmem:[%s0] sm:$0xff]
    %v51 = vld [vmem:[%s0 + $0x8] sm:$0xff]
    %v52 = vld [vmem:[%s0 + $0x10] sm:$0xff]
    %v53 = vld [vmem:[%s0 + $0x18] sm:$0xff]
    %v54 = vld [vmem:[%s0 + $0x20] sm:$0xff]
    %v55 = vld [vmem:[%s0 + $0x28] sm:$0xff]
    %v56 = vld [vmem:[%s0 + $0x30] sm:$0xff]
    %v57 = vld [vmem:[%s0 + $0x38] sm:$0xff]
    %66 = vrot.lane.b32.xlu0 %v50, 112
    %v67 = vpop.permute.xlu0 %66
    %68 = vrot.lane.b32.xlu0 %v51, 112
    %v69 = vpop.permute.xlu0 %68
    %70 = vrot.lane.b32.xlu0 %v52, 112
    %v71 = vpop.permute.xlu0 %70
    %72 = vrot.lane.b32.xlu0 %v53, 112
    %v73 = vpop.permute.xlu0 %72
    %74 = vrot.lane.b32.xlu0 %v54, 112
    %v75 = vpop.permute.xlu0 %74
    %76 = vrot.lane.b32.xlu0 %v55, 112
    %v77 = vpop.permute.xlu0 %76
    %78 = vrot.lane.b32.xlu0 %v56, 112
    %v79 = vpop.permute.xlu0 %78
    %80 = vrot.lane.b32.xlu0 %v57, 112
    %v81 = vpop.permute.xlu0 %80
    %v90 = vadd.f32 %v50, %v67
    %v91 = vadd.f32 %v51, %v69
    %v92 = vadd.f32 %v52, %v71
    %v93 = vadd.f32 %v53, %v73
    %v94 = vadd.f32 %v54, %v75
    %v95 = vadd.f32 %v55, %v77
    %v96 = vadd.f32 %v56, %v79
    %v97 = vadd.f32 %v57, %v81
    %98 = vrot.lane.b32.xlu0 %v50, 96
    %v99 = vpop.permute.xlu0 %98
    %100 = vrot.lane.b32.xlu0 %v51, 96
    %v101 = vpop.permute.xlu0 %100
    %102 = vrot.lane.b32.xlu0 %v52, 96
    %v103 = vpop.permute.xlu0 %102
    %104 = vrot.lane.b32.xlu0 %v53, 96
    %v105 = vpop.permute.xlu0 %104
    %106 = vrot.lane.b32.xlu0 %v54, 96
    %v107 = vpop.permute.xlu0 %106
    %108 = vrot.lane.b32.xlu0 %v55, 96
    %v109 = vpop.permute.xlu0 %108
    %110 = vrot.lane.b32.xlu0 %v56, 96
    %v111 = vpop.permute.xlu0 %110
    %112 = vrot.lane.b32.xlu0 %v57, 96
    %v113 = vpop.permute.xlu0 %112
    %v122 = vadd.f32 %v90, %v99
    %v123 = vadd.f32 %v91, %v101
    %v124 = vadd.f32 %v92, %v103
    %v125 = vadd.f32 %v93, %v105
    %v126 = vadd.f32 %v94, %v107
    %v127 = vadd.f32 %v95, %v109
    %v128 = vadd.f32 %v96, %v111
    %v129 = vadd.f32 %v97, %v113
    %130 = vrot.lane.b32.xlu0 %v50, 80
    %v131 = vpop.permute.xlu0 %130
    %132 = vrot.lane.b32.xlu0 %v51, 80
    %v133 = vpop.permute.xlu0 %132
    %134 = vrot.lane.b32.xlu0 %v52, 80
    %v135 = vpop.permute.xlu0 %134
    %136 = vrot.lane.b32.xlu0 %v53, 80
    %v137 = vpop.permute.xlu0 %136
    %138 = vrot.lane.b32.xlu0 %v54, 80
    %v139 = vpop.permute.xlu0 %138
    %140 = vrot.lane.b32.xlu0 %v55, 80
    %v141 = vpop.permute.xlu0 %140
    %142 = vrot.lane.b32.xlu0 %v56, 80
    %v143 = vpop.permute.xlu0 %142
    %144 = vrot.lane.b32.xlu0 %v57, 80
    %v145 = vpop.permute.xlu0 %144
    %v154 = vadd.f32 %v122, %v131
    %v155 = vadd.f32 %v123, %v133
    %v156 = vadd.f32 %v124, %v135
    %v157 = vadd.f32 %v125, %v137
    %v158 = vadd.f32 %v126, %v139
    %v159 = vadd.f32 %v127, %v141
    %v160 = vadd.f32 %v128, %v143
    %v161 = vadd.f32 %v129, %v145
    %162 = vrot.lane.b32.xlu0 %v50, 64
    %v163 = vpop.permute.xlu0 %162
    %164 = vrot.lane.b32.xlu0 %v51, 64
    %v165 = vpop.permute.xlu0 %164
    %166 = vrot.lane.b32.xlu0 %v52, 64
    %v167 = vpop.permute.xlu0 %166
    %168 = vrot.lane.b32.xlu0 %v53, 64
    %v169 = vpop.permute.xlu0 %168
    %170 = vrot.lane.b32.xlu0 %v54, 64
    %v171 = vpop.permute.xlu0 %170
    %172 = vrot.lane.b32.xlu0 %v55, 64
    %v173 = vpop.permute.xlu0 %172
    %174 = vrot.lane.b32.xlu0 %v56, 64
    %v175 = vpop.permute.xlu0 %174
    %176 = vrot.lane.b32.xlu0 %v57, 64
    %v177 = vpop.permute.xlu0 %176
    %v186 = vadd.f32 %v154, %v163
    %v187 = vadd.f32 %v155, %v165
    %v188 = vadd.f32 %v156, %v167
    %v189 = vadd.f32 %v157, %v169
    %v190 = vadd.f32 %v158, %v171
    %v191 = vadd.f32 %v159, %v173
    %v192 = vadd.f32 %v160, %v175
    %v193 = vadd.f32 %v161, %v177
    %194 = vrot.lane.b32.xlu0 %v50, 48
    %v195 = vpop.permute.xlu0 %194
    %196 = vrot.lane.b32.xlu0 %v51, 48
    %v197 = vpop.permute.xlu0 %196
    %198 = vrot.lane.b32.xlu0 %v52, 48
    %v199 = vpop.permute.xlu0 %198
    %200 = vrot.lane.b32.xlu0 %v53, 48
    %v201 = vpop.permute.xlu0 %200
    %202 = vrot.lane.b32.xlu0 %v54, 48
    %v203 = vpop.permute.xlu0 %202
    %204 = vrot.lane.b32.xlu0 %v55, 48
    %v205 = vpop.permute.xlu0 %204
    %206 = vrot.lane.b32.xlu0 %v56, 48
    %v207 = vpop.permute.xlu0 %206
    %208 = vrot.lane.b32.xlu0 %v57, 48
    %v209 = vpop.permute.xlu0 %208
    %v218 = vadd.f32 %v186, %v195
    %v219 = vadd.f32 %v187, %v197
    %v220 = vadd.f32 %v188, %v199
    %v221 = vadd.f32 %v189, %v201
    %v222 = vadd.f32 %v190, %v203
    %v223 = vadd.f32 %v191, %v205
    %v224 = vadd.f32 %v192, %v207
    %v225 = vadd.f32 %v193, %v209
    %226 = vrot.lane.b32.xlu0 %v50, 32
    %v227 = vpop.permute.xlu0 %226
    %228 = vrot.lane.b32.xlu0 %v51, 32
    %v229 = vpop.permute.xlu0 %228
    %230 = vrot.lane.b32.xlu0 %v52, 32
    %v231 = vpop.permute.xlu0 %230
    %232 = vrot.lane.b32.xlu0 %v53, 32
    %v233 = vpop.permute.xlu0 %232
    %234 = vrot.lane.b32.xlu0 %v54, 32
    %v235 = vpop.permute.xlu0 %234
    %236 = vrot.lane.b32.xlu0 %v55, 32
    %v237 = vpop.permute.xlu0 %236
    %238 = vrot.lane.b32.xlu0 %v56, 32
    %v239 = vpop.permute.xlu0 %238
    %240 = vrot.lane.b32.xlu0 %v57, 32
    %v241 = vpop.permute.xlu0 %240
    %v250 = vadd.f32 %v218, %v227
    %v251 = vadd.f32 %v219, %v229
    %v252 = vadd.f32 %v220, %v231
    %v253 = vadd.f32 %v221, %v233
    %v254 = vadd.f32 %v222, %v235
    %v255 = vadd.f32 %v223, %v237
    %v256 = vadd.f32 %v224, %v239
    %v257 = vadd.f32 %v225, %v241
    %258 = vrot.lane.b32.xlu0 %v50, 16
    %v259 = vpop.permute.xlu0 %258
    %260 = vrot.lane.b32.xlu0 %v51, 16
    %v261 = vpop.permute.xlu0 %260
    %262 = vrot.lane.b32.xlu0 %v52, 16
    %v263 = vpop.permute.xlu0 %262
    %264 = vrot.lane.b32.xlu0 %v53, 16
    %v265 = vpop.permute.xlu0 %264
    %266 = vrot.lane.b32.xlu0 %v54, 16
    %v267 = vpop.permute.xlu0 %266
    %268 = vrot.lane.b32.xlu0 %v55, 16
    %v269 = vpop.permute.xlu0 %268
    %270 = vrot.lane.b32.xlu0 %v56, 16
    %v271 = vpop.permute.xlu0 %270
    %272 = vrot.lane.b32.xlu0 %v57, 16
    %v273 = vpop.permute.xlu0 %272
    %v282 = vadd.f32 %v250, %v259
    %v283 = vadd.f32 %v251, %v261
    %v284 = vadd.f32 %v252, %v263
    %v285 = vadd.f32 %v253, %v265
    %v286 = vadd.f32 %v254, %v267
    %v287 = vadd.f32 %v255, %v269
    %v288 = vadd.f32 %v256, %v271
    %v289 = vadd.f32 %v257, %v273
    %v290 = vld [vmem:[%s1] sm:$0xff]
    %v291 = vld [vmem:[%s1 + $0x8] sm:$0xff]
    %v292 = vld [vmem:[%s1 + $0x10] sm:$0xff]
    %v293 = vld [vmem:[%s1 + $0x18] sm:$0xff]
    %v294 = vld [vmem:[%s1 + $0x20] sm:$0xff]
    %v295 = vld [vmem:[%s1 + $0x28] sm:$0xff]
    %vm296 = vcmask 261120
    %v298 = vsel %vm296, %v290, 0
    %v301 = vsel %vm296, %v291, 0
    %v304 = vsel %vm296, %v292, 0
    %v307 = vsel %vm296, %v293, 0
    %v310 = vsel %vm296, %v294, 0
    %v313 = vsel %vm296, %v295, 0
    %315 = vmatpush.msra.mxu0 0.0
    %316 = vmatpush.msra.mxu0 0.0
    %317 = vmatpush.msra.mxu0 0.0
    %318 = vmatpush.msra.mxu0 0.0
    %319 = vmatpush.msra.mxu0 0.0
    %320 = vmatpush.msra.mxu0 0.0
    %321 = vmatpush.msra.mxu0 0.0
    %322 = vmatpush.msra.mxu0 0.0
    %323 = vmatpush.msra.mxu0 0.0
    %324 = vmatpush.msra.mxu0 0.0
    %325 = vmatpush.msra.mxu0 0.0
    %326 = vmatpush.msra.mxu0 0.0
    %v327 = vand.u32 %v285, 4294901760
    %328 = vmatpush.msra.mxu0 %v327
    %v329 = vand.u32 %v284, 4294901760
    %330 = vmatpush.msra.mxu0 %v329
    %v331 = vand.u32 %v283, 4294901760
    %332 = vmatpush.msra.mxu0 %v331
    %v333 = vand.u32 %v282, 4294901760
    %334 = vmatpush.msra.mxu0 %v333
    %v335 = vand.u32 %v298, 4294901760
    %v336 = vsub.f32 %v298, %v335
    %v337 = vand.u32 %v336, 4294901760
    %v338 = vsub.f32 %v336, %v337
    %v339 = vand.u32 %v338, 4294901760
    %340 = vmatmul.f32.gmra.mxu0 %v339
    %v341 = vpop.f32.mrf.mxu0
    %v342 = vadd.f32 0.0, %v341
    %v343 = vand.u32 %v301, 4294901760
    %v344 = vsub.f32 %v301, %v343
    %v345 = vand.u32 %v344, 4294901760
    %v346 = vsub.f32 %v344, %v345
    %v347 = vand.u32 %v346, 4294901760
    %348 = vmatmul.f32.gmra.mxu0 %v347
    %v349 = vpop.f32.mrf.mxu0
    %v350 = vadd.f32 0.0, %v349
    %v351 = vand.u32 %v304, 4294901760
    %v352 = vsub.f32 %v304, %v351
    %v353 = vand.u32 %v352, 4294901760
    %v354 = vsub.f32 %v352, %v353
    %v355 = vand.u32 %v354, 4294901760
    %356 = vmatmul.f32.gmra.mxu0 %v355
    %v357 = vpop.f32.mrf.mxu0
    %v358 = vadd.f32 0.0, %v357
    %v359 = vand.u32 %v307, 4294901760
    %v360 = vsub.f32 %v307, %v359
    %v361 = vand.u32 %v360, 4294901760
    %v362 = vsub.f32 %v360, %v361
    %v363 = vand.u32 %v362, 4294901760
    %364 = vmatmul.f32.gmra.mxu0 %v363
    %v365 = vpop.f32.mrf.mxu0
    %v366 = vadd.f32 0.0, %v365
    %v367 = vand.u32 %v310, 4294901760
    %v368 = vsub.f32 %v310, %v367
    %v369 = vand.u32 %v368, 4294901760
    %v370 = vsub.f32 %v368, %v369
    %v371 = vand.u32 %v370, 4294901760
    %372 = vmatmul.f32.gmra.mxu0 %v371
    %v373 = vpop.f32.mrf.mxu0
    %v374 = vadd.f32 0.0, %v373
    %v375 = vand.u32 %v313, 4294901760
    %v376 = vsub.f32 %v313, %v375
    %v377 = vand.u32 %v376, 4294901760
    %v378 = vsub.f32 %v376, %v377
    %v379 = vand.u32 %v378, 4294901760
    %380 = vmatmul.f32.gmra.mxu0 %v379
    %v381 = vpop.f32.mrf.mxu0
    %v382 = vadd.f32 0.0, %v381
    %383 = vdwg.mxu0
    %384 = vmatpush.msra.mxu0 0.0
    %385 = vmatpush.msra.mxu0 0.0
    %386 = vmatpush.msra.mxu0 0.0
    %387 = vmatpush.msra.mxu0 0.0
    %388 = vmatpush.msra.mxu0 0.0
    %389 = vmatpush.msra.mxu0 0.0
    %390 = vmatpush.msra.mxu0 0.0
    %391 = vmatpush.msra.mxu0 0.0
    %392 = vmatpush.msra.mxu0 0.0
    %393 = vmatpush.msra.mxu0 0.0
    %394 = vmatpush.msra.mxu0 0.0
    %395 = vmatpush.msra.mxu0 0.0
    %v396 = vand.u32 %v285, 4294901760
    %v397 = vsub.f32 %v285, %v396
    %v398 = vand.u32 %v397, 4294901760
    %v399 = vsub.f32 %v397, %v398
    %v400 = vand.u32 %v399, 4294901760
    %401 = vmatpush.msra.mxu0 %v400
    %v402 = vand.u32 %v284, 4294901760
    %v403 = vsub.f32 %v284, %v402
    %v404 = vand.u32 %v403, 4294901760
    %v405 = vsub.f32 %v403, %v404
    %v406 = vand.u32 %v405, 4294901760
    %407 = vmatpush.msra.mxu0 %v406
    %v408 = vand.u32 %v283, 4294901760
    %v409 = vsub.f32 %v283, %v408
    %v410 = vand.u32 %v409, 4294901760
    %v411 = vsub.f32 %v409, %v410
    %v412 = vand.u32 %v411, 4294901760
    %413 = vmatpush.msra.mxu0 %v412
    %v414 = vand.u32 %v282, 4294901760
    %v415 = vsub.f32 %v282, %v414
    %v416 = vand.u32 %v415, 4294901760
    %v417 = vsub.f32 %v415, %v416
    %v418 = vand.u32 %v417, 4294901760
    %419 = vmatpush.msra.mxu0 %v418
    %v420 = vand.u32 %v298, 4294901760
    %421 = vmatmul.f32.gmra.mxu0 %v420
    %v422 = vpop.f32.mrf.mxu0
    %v423 = vadd.f32 %v342, %v422
    %v424 = vand.u32 %v301, 4294901760
    %425 = vmatmul.f32.gmra.mxu0 %v424
    %v426 = vpop.f32.mrf.mxu0
    %v427 = vadd.f32 %v350, %v426
    %v428 = vand.u32 %v304, 4294901760
    %429 = vmatmul.f32.gmra.mxu0 %v428
    %v430 = vpop.f32.mrf.mxu0
    %v431 = vadd.f32 %v358, %v430
    %v432 = vand.u32 %v307, 4294901760
    %433 = vmatmul.f32.gmra.mxu0 %v432
    %v434 = vpop.f32.mrf.mxu0
    %v435 = vadd.f32 %v366, %v434
    %v436 = vand.u32 %v310, 4294901760
    %437 = vmatmul.f32.gmra.mxu0 %v436
    %v438 = vpop.f32.mrf.mxu0
    %v439 = vadd.f32 %v374, %v438
    %v440 = vand.u32 %v313, 4294901760
    %441 = vmatmul.f32.gmra.mxu0 %v440
    %v442 = vpop.f32.mrf.mxu0
    %v443 = vadd.f32 %v382, %v442
    %444 = vdwg.mxu0
    %445 = vmatpush.msra.mxu0 0.0
    %446 = vmatpush.msra.mxu0 0.0
    %447 = vmatpush.msra.mxu0 0.0
    %448 = vmatpush.msra.mxu0 0.0
    %449 = vmatpush.msra.mxu0 0.0
    %450 = vmatpush.msra.mxu0 0.0
    %451 = vmatpush.msra.mxu0 0.0
    %452 = vmatpush.msra.mxu0 0.0
    %453 = vmatpush.msra.mxu0 0.0
    %454 = vmatpush.msra.mxu0 0.0
    %455 = vmatpush.msra.mxu0 0.0
    %456 = vmatpush.msra.mxu0 0.0
    %v457 = vand.u32 %v285, 4294901760
    %v458 = vsub.f32 %v285, %v457
    %459 = vmatpush.msra.mxu0 %v458
    %v460 = vand.u32 %v284, 4294901760
    %v461 = vsub.f32 %v284, %v460
    %462 = vmatpush.msra.mxu0 %v461
    %v463 = vand.u32 %v283, 4294901760
    %v464 = vsub.f32 %v283, %v463
    %465 = vmatpush.msra.mxu0 %v464
    %v466 = vand.u32 %v282, 4294901760
    %v467 = vsub.f32 %v282, %v466
    %468 = vmatpush.msra.mxu0 %v467
    %v469 = vand.u32 %v298, 4294901760
    %v470 = vsub.f32 %v298, %v469
    %471 = vmatmul.f32.gmra.mxu0 %v470
    %v472 = vpop.f32.mrf.mxu0
    %v473 = vadd.f32 %v423, %v472
    %v474 = vand.u32 %v301, 4294901760
    %v475 = vsub.f32 %v301, %v474
    %476 = vmatmul.f32.gmra.mxu0 %v475
    %v477 = vpop.f32.mrf.mxu0
    %v478 = vadd.f32 %v427, %v477
    %v479 = vand.u32 %v304, 4294901760
    %v480 = vsub.f32 %v304, %v479
    %481 = vmatmul.f32.gmra.mxu0 %v480
    %v482 = vpop.f32.mrf.mxu0
    %v483 = vadd.f32 %v431, %v482
    %v484 = vand.u32 %v307, 4294901760
    %v485 = vsub.f32 %v307, %v484
    %486 = vmatmul.f32.gmra.mxu0 %v485
    %v487 = vpop.f32.mrf.mxu0
    %v488 = vadd.f32 %v435, %v487
    %v489 = vand.u32 %v310, 4294901760
    %v490 = vsub.f32 %v310, %v489
    %491 = vmatmul.f32.gmra.mxu0 %v490
    %v492 = vpop.f32.mrf.mxu0
    %v493 = vadd.f32 %v439, %v492
    %v494 = vand.u32 %v313, 4294901760
    %v495 = vsub.f32 %v313, %v494
    %496 = vmatmul.f32.gmra.mxu0 %v495
    %v497 = vpop.f32.mrf.mxu0
    %v498 = vadd.f32 %v443, %v497
    %499 = vdwg.mxu0
    %500 = vmatpush.msra.mxu0 0.0
    %501 = vmatpush.msra.mxu0 0.0
    %502 = vmatpush.msra.mxu0 0.0
    %503 = vmatpush.msra.mxu0 0.0
    %504 = vmatpush.msra.mxu0 0.0
    %505 = vmatpush.msra.mxu0 0.0
    %506 = vmatpush.msra.mxu0 0.0
    %507 = vmatpush.msra.mxu0 0.0
    %508 = vmatpush.msra.mxu0 0.0
    %509 = vmatpush.msra.mxu0 0.0
    %510 = vmatpush.msra.mxu0 0.0
    %511 = vmatpush.msra.mxu0 0.0
    %v512 = vand.u32 %v285, 4294901760
    %513 = vmatpush.msra.mxu0 %v512
    %v514 = vand.u32 %v284, 4294901760
    %515 = vmatpush.msra.mxu0 %v514
    %v516 = vand.u32 %v283, 4294901760
    %517 = vmatpush.msra.mxu0 %v516
    %v518 = vand.u32 %v282, 4294901760
    %519 = vmatpush.msra.mxu0 %v518
    %v520 = vand.u32 %v298, 4294901760
    %v521 = vsub.f32 %v298, %v520
    %v522 = vand.u32 %v521, 4294901760
    %523 = vmatmul.f32.gmra.mxu0 %v522
    %v524 = vpop.f32.mrf.mxu0
    %v525 = vadd.f32 %v473, %v524
    %v526 = vand.u32 %v301, 4294901760
    %v527 = vsub.f32 %v301, %v526
    %v528 = vand.u32 %v527, 4294901760
    %529 = vmatmul.f32.gmra.mxu0 %v528
    %v530 = vpop.f32.mrf.mxu0
    %v531 = vadd.f32 %v478, %v530
    %v532 = vand.u32 %v304, 4294901760
    %v533 = vsub.f32 %v304, %v532
    %v534 = vand.u32 %v533, 4294901760
    %535 = vmatmul.f32.gmra.mxu0 %v534
    %v536 = vpop.f32.mrf.mxu0
    %v537 = vadd.f32 %v483, %v536
    %v538 = vand.u32 %v307, 4294901760
    %v539 = vsub.f32 %v307, %v538
    %v540 = vand.u32 %v539, 4294901760
    %541 = vmatmul.f32.gmra.mxu0 %v540
    %v542 = vpop.f32.mrf.mxu0
    %v543 = vadd.f32 %v488, %v542
    %v544 = vand.u32 %v310, 4294901760
    %v545 = vsub.f32 %v310, %v544
    %v546 = vand.u32 %v545, 4294901760
    %547 = vmatmul.f32.gmra.mxu0 %v546
    %v548 = vpop.f32.mrf.mxu0
    %v549 = vadd.f32 %v493, %v548
    %v550 = vand.u32 %v313, 4294901760
    %v551 = vsub.f32 %v313, %v550
    %v552 = vand.u32 %v551, 4294901760
    %553 = vmatmul.f32.gmra.mxu0 %v552
    %v554 = vpop.f32.mrf.mxu0
    %v555 = vadd.f32 %v498, %v554
    %556 = vdwg.mxu0
    %557 = vmatpush.msra.mxu0 0.0
    %558 = vmatpush.msra.mxu0 0.0
    %559 = vmatpush.msra.mxu0 0.0
    %560 = vmatpush.msra.mxu0 0.0
    %561 = vmatpush.msra.mxu0 0.0
    %562 = vmatpush.msra.mxu0 0.0
    %563 = vmatpush.msra.mxu0 0.0
    %564 = vmatpush.msra.mxu0 0.0
    %565 = vmatpush.msra.mxu0 0.0
    %566 = vmatpush.msra.mxu0 0.0
    %567 = vmatpush.msra.mxu0 0.0
    %568 = vmatpush.msra.mxu0 0.0
    %v569 = vand.u32 %v285, 4294901760
    %v570 = vsub.f32 %v285, %v569
    %v571 = vand.u32 %v570, 4294901760
    %572 = vmatpush.msra.mxu0 %v571
    %v573 = vand.u32 %v284, 4294901760
    %v574 = vsub.f32 %v284, %v573
    %v575 = vand.u32 %v574, 4294901760
    %576 = vmatpush.msra.mxu0 %v575
    %v577 = vand.u32 %v283, 4294901760
    %v578 = vsub.f32 %v283, %v577
    %v579 = vand.u32 %v578, 4294901760
    %580 = vmatpush.msra.mxu0 %v579
    %v581 = vand.u32 %v282, 4294901760
    %v582 = vsub.f32 %v282, %v581
    %v583 = vand.u32 %v582, 4294901760
    %584 = vmatpush.msra.mxu0 %v583
    %v585 = vand.u32 %v298, 4294901760
    %586 = vmatmul.f32.gmra.mxu0 %v585
    %v587 = vpop.f32.mrf.mxu0
    %v588 = vadd.f32 %v525, %v587
    %v589 = vand.u32 %v301, 4294901760
    %590 = vmatmul.f32.gmra.mxu0 %v589
    %v591 = vpop.f32.mrf.mxu0
    %v592 = vadd.f32 %v531, %v591
    %v593 = vand.u32 %v304, 4294901760
    %594 = vmatmul.f32.gmra.mxu0 %v593
    %v595 = vpop.f32.mrf.mxu0
    %v596 = vadd.f32 %v537, %v595
    %v597 = vand.u32 %v307, 4294901760
    %598 = vmatmul.f32.gmra.mxu0 %v597
    %v599 = vpop.f32.mrf.mxu0
    %v600 = vadd.f32 %v543, %v599
    %v601 = vand.u32 %v310, 4294901760
    %602 = vmatmul.f32.gmra.mxu0 %v601
    %v603 = vpop.f32.mrf.mxu0
    %v604 = vadd.f32 %v549, %v603
    %v605 = vand.u32 %v313, 4294901760
    %606 = vmatmul.f32.gmra.mxu0 %v605
    %v607 = vpop.f32.mrf.mxu0
    %v608 = vadd.f32 %v555, %v607
    %609 = vdwg.mxu0
    %610 = vmatpush.msra.mxu0 0.0
    %611 = vmatpush.msra.mxu0 0.0
    %612 = vmatpush.msra.mxu0 0.0
    %613 = vmatpush.msra.mxu0 0.0
    %614 = vmatpush.msra.mxu0 0.0
    %615 = vmatpush.msra.mxu0 0.0
    %616 = vmatpush.msra.mxu0 0.0
    %617 = vmatpush.msra.mxu0 0.0
    %618 = vmatpush.msra.mxu0 0.0
    %619 = vmatpush.msra.mxu0 0.0
    %620 = vmatpush.msra.mxu0 0.0
    %621 = vmatpush.msra.mxu0 0.0
    %v622 = vand.u32 %v285, 4294901760
    %623 = vmatpush.msra.mxu0 %v622
    %v624 = vand.u32 %v284, 4294901760
    %625 = vmatpush.msra.mxu0 %v624
    %v626 = vand.u32 %v283, 4294901760
    %627 = vmatpush.msra.mxu0 %v626
    %v628 = vand.u32 %v282, 4294901760
    %629 = vmatpush.msra.mxu0 %v628
    %v630 = vand.u32 %v298, 4294901760
    %631 = vmatmul.f32.gmra.mxu0 %v630
    %v632 = vpop.f32.mrf.mxu0
    %v633 = vadd.f32 %v588, %v632
    %v634 = vand.u32 %v301, 4294901760
    %635 = vmatmul.f32.gmra.mxu0 %v634
    %v636 = vpop.f32.mrf.mxu0
    %v637 = vadd.f32 %v592, %v636
    %v638 = vand.u32 %v304, 4294901760
    %639 = vmatmul.f32.gmra.mxu0 %v638
    %v640 = vpop.f32.mrf.mxu0
    %v641 = vadd.f32 %v596, %v640
    %v642 = vand.u32 %v307, 4294901760
    %643 = vmatmul.f32.gmra.mxu0 %v642
    %v644 = vpop.f32.mrf.mxu0
    %v645 = vadd.f32 %v600, %v644
    %v646 = vand.u32 %v310, 4294901760
    %647 = vmatmul.f32.gmra.mxu0 %v646
    %v648 = vpop.f32.mrf.mxu0
    %v649 = vadd.f32 %v604, %v648
    %v650 = vand.u32 %v313, 4294901760
    %651 = vmatmul.f32.gmra.mxu0 %v650
    %v652 = vpop.f32.mrf.mxu0
    %v653 = vadd.f32 %v608, %v652
    %654 = vdwg.mxu0
    %655 = vmatpush.msra.mxu0 0.0
    %656 = vmatpush.msra.mxu0 0.0
    %657 = vmatpush.msra.mxu0 0.0
    %658 = vmatpush.msra.mxu0 0.0
    %659 = vmatpush.msra.mxu0 0.0
    %660 = vmatpush.msra.mxu0 0.0
    %661 = vmatpush.msra.mxu0 0.0
    %662 = vmatpush.msra.mxu0 0.0
    %663 = vmatpush.msra.mxu0 0.0
    %664 = vmatpush.msra.mxu0 0.0
    %665 = vmatpush.msra.mxu0 0.0
    %666 = vmatpush.msra.mxu0 0.0
    %v667 = vand.u32 %v289, 4294901760
    %668 = vmatpush.msra.mxu0 %v667
    %v669 = vand.u32 %v288, 4294901760
    %670 = vmatpush.msra.mxu0 %v669
    %v671 = vand.u32 %v287, 4294901760
    %672 = vmatpush.msra.mxu0 %v671
    %v673 = vand.u32 %v286, 4294901760
    %674 = vmatpush.msra.mxu0 %v673
    %v675 = vand.u32 %v298, 4294901760
    %v676 = vsub.f32 %v298, %v675
    %v677 = vand.u32 %v676, 4294901760
    %v678 = vsub.f32 %v676, %v677
    %v679 = vand.u32 %v678, 4294901760
    %680 = vmatmul.f32.gmra.mxu0 %v679
    %v681 = vpop.f32.mrf.mxu0
    %v682 = vadd.f32 0.0, %v681
    %v683 = vand.u32 %v301, 4294901760
    %v684 = vsub.f32 %v301, %v683
    %v685 = vand.u32 %v684, 4294901760
    %v686 = vsub.f32 %v684, %v685
    %v687 = vand.u32 %v686, 4294901760
    %688 = vmatmul.f32.gmra.mxu0 %v687
    %v689 = vpop.f32.mrf.mxu0
    %v690 = vadd.f32 0.0, %v689
    %v691 = vand.u32 %v304, 4294901760
    %v692 = vsub.f32 %v304, %v691
    %v693 = vand.u32 %v692, 4294901760
    %v694 = vsub.f32 %v692, %v693
    %v695 = vand.u32 %v694, 4294901760
    %696 = vmatmul.f32.gmra.mxu0 %v695
    %v697 = vpop.f32.mrf.mxu0
    %v698 = vadd.f32 0.0, %v697
    %v699 = vand.u32 %v307, 4294901760
    %v700 = vsub.f32 %v307, %v699
    %v701 = vand.u32 %v700, 4294901760
    %v702 = vsub.f32 %v700, %v701
    %v703 = vand.u32 %v702, 4294901760
    %704 = vmatmul.f32.gmra.mxu0 %v703
    %v705 = vpop.f32.mrf.mxu0
    %v706 = vadd.f32 0.0, %v705
    %v707 = vand.u32 %v310, 4294901760
    %v708 = vsub.f32 %v310, %v707
    %v709 = vand.u32 %v708, 4294901760
    %v710 = vsub.f32 %v708, %v709
    %v711 = vand.u32 %v710, 4294901760
    %712 = vmatmul.f32.gmra.mxu0 %v711
    %v713 = vpop.f32.mrf.mxu0
    %v714 = vadd.f32 0.0, %v713
    %v715 = vand.u32 %v313, 4294901760
    %v716 = vsub.f32 %v313, %v715
    %v717 = vand.u32 %v716, 4294901760
    %v718 = vsub.f32 %v716, %v717
    %v719 = vand.u32 %v718, 4294901760
    %720 = vmatmul.f32.gmra.mxu0 %v719
    %v721 = vpop.f32.mrf.mxu0
    %v722 = vadd.f32 0.0, %v721
    %723 = vdwg.mxu0
    %724 = vmatpush.msra.mxu0 0.0
    %725 = vmatpush.msra.mxu0 0.0
    %726 = vmatpush.msra.mxu0 0.0
    %727 = vmatpush.msra.mxu0 0.0
    %728 = vmatpush.msra.mxu0 0.0
    %729 = vmatpush.msra.mxu0 0.0
    %730 = vmatpush.msra.mxu0 0.0
    %731 = vmatpush.msra.mxu0 0.0
    %732 = vmatpush.msra.mxu0 0.0
    %733 = vmatpush.msra.mxu0 0.0
    %734 = vmatpush.msra.mxu0 0.0
    %735 = vmatpush.msra.mxu0 0.0
    %v736 = vand.u32 %v289, 4294901760
    %v737 = vsub.f32 %v289, %v736
    %v738 = vand.u32 %v737, 4294901760
    %v739 = vsub.f32 %v737, %v738
    %v740 = vand.u32 %v739, 4294901760
    %741 = vmatpush.msra.mxu0 %v740
    %v742 = vand.u32 %v288, 4294901760
    %v743 = vsub.f32 %v288, %v742
    %v744 = vand.u32 %v743, 4294901760
    %v745 = vsub.f32 %v743, %v744
    %v746 = vand.u32 %v745, 4294901760
    %747 = vmatpush.msra.mxu0 %v746
    %v748 = vand.u32 %v287, 4294901760
    %v749 = vsub.f32 %v287, %v748
    %v750 = vand.u32 %v749, 4294901760
    %v751 = vsub.f32 %v749, %v750
    %v752 = vand.u32 %v751, 4294901760
    %753 = vmatpush.msra.mxu0 %v752
    %v754 = vand.u32 %v286, 4294901760
    %v755 = vsub.f32 %v286, %v754
    %v756 = vand.u32 %v755, 4294901760
    %v757 = vsub.f32 %v755, %v756
    %v758 = vand.u32 %v757, 4294901760
    %759 = vmatpush.msra.mxu0 %v758
    %v760 = vand.u32 %v298, 4294901760
    %761 = vmatmul.f32.gmra.mxu0 %v760
    %v762 = vpop.f32.mrf.mxu0
    %v763 = vadd.f32 %v682, %v762
    %v764 = vand.u32 %v301, 4294901760
    %765 = vmatmul.f32.gmra.mxu0 %v764
    %v766 = vpop.f32.mrf.mxu0
    %v767 = vadd.f32 %v690, %v766
    %v768 = vand.u32 %v304, 4294901760
    %769 = vmatmul.f32.gmra.mxu0 %v768
    %v770 = vpop.f32.mrf.mxu0
    %v771 = vadd.f32 %v698, %v770
    %v772 = vand.u32 %v307, 4294901760
    %773 = vmatmul.f32.gmra.mxu0 %v772
    %v774 = vpop.f32.mrf.mxu0
    %v775 = vadd.f32 %v706, %v774
    %v776 = vand.u32 %v310, 4294901760
    %777 = vmatmul.f32.gmra.mxu0 %v776
    %v778 = vpop.f32.mrf.mxu0
    %v779 = vadd.f32 %v714, %v778
    %v780 = vand.u32 %v313, 4294901760
    %781 = vmatmul.f32.gmra.mxu0 %v780
    %v782 = vpop.f32.mrf.mxu0
    %v783 = vadd.f32 %v722, %v782
    %784 = vdwg.mxu0
    %785 = vmatpush.msra.mxu0 0.0
    %786 = vmatpush.msra.mxu0 0.0
    %787 = vmatpush.msra.mxu0 0.0
    %788 = vmatpush.msra.mxu0 0.0
    %789 = vmatpush.msra.mxu0 0.0
    %790 = vmatpush.msra.mxu0 0.0
    %791 = vmatpush.msra.mxu0 0.0
    %792 = vmatpush.msra.mxu0 0.0
    %793 = vmatpush.msra.mxu0 0.0
    %794 = vmatpush.msra.mxu0 0.0
    %795 = vmatpush.msra.mxu0 0.0
    %796 = vmatpush.msra.mxu0 0.0
    %v797 = vand.u32 %v289, 4294901760
    %v798 = vsub.f32 %v289, %v797
    %799 = vmatpush.msra.mxu0 %v798
    %v800 = vand.u32 %v288, 4294901760
    %v801 = vsub.f32 %v288, %v800
    %802 = vmatpush.msra.mxu0 %v801
    %v803 = vand.u32 %v287, 4294901760
    %v804 = vsub.f32 %v287, %v803
    %805 = vmatpush.msra.mxu0 %v804
    %v806 = vand.u32 %v286, 4294901760
    %v807 = vsub.f32 %v286, %v806
    %808 = vmatpush.msra.mxu0 %v807
    %v809 = vand.u32 %v298, 4294901760
    %v810 = vsub.f32 %v298, %v809
    %811 = vmatmul.f32.gmra.mxu0 %v810
    %v812 = vpop.f32.mrf.mxu0
    %v813 = vadd.f32 %v763, %v812
    %v814 = vand.u32 %v301, 4294901760
    %v815 = vsub.f32 %v301, %v814
    %816 = vmatmul.f32.gmra.mxu0 %v815
    %v817 = vpop.f32.mrf.mxu0
    %v818 = vadd.f32 %v767, %v817
    %v819 = vand.u32 %v304, 4294901760
    %v820 = vsub.f32 %v304, %v819
    %821 = vmatmul.f32.gmra.mxu0 %v820
    %v822 = vpop.f32.mrf.mxu0
    %v823 = vadd.f32 %v771, %v822
    %v824 = vand.u32 %v307, 4294901760
    %v825 = vsub.f32 %v307, %v824
    %826 = vmatmul.f32.gmra.mxu0 %v825
    %v827 = vpop.f32.mrf.mxu0
    %v828 = vadd.f32 %v775, %v827
    %v829 = vand.u32 %v310, 4294901760
    %v830 = vsub.f32 %v310, %v829
    %831 = vmatmul.f32.gmra.mxu0 %v830
    %v832 = vpop.f32.mrf.mxu0
    %v833 = vadd.f32 %v779, %v832
    %v834 = vand.u32 %v313, 4294901760
    %v835 = vsub.f32 %v313, %v834
    %836 = vmatmul.f32.gmra.mxu0 %v835
    %v837 = vpop.f32.mrf.mxu0
    %v838 = vadd.f32 %v783, %v837
    %839 = vdwg.mxu0
    %840 = vmatpush.msra.mxu0 0.0
    %841 = vmatpush.msra.mxu0 0.0
    %842 = vmatpush.msra.mxu0 0.0
    %843 = vmatpush.msra.mxu0 0.0
    %844 = vmatpush.msra.mxu0 0.0
    %845 = vmatpush.msra.mxu0 0.0
    %846 = vmatpush.msra.mxu0 0.0
    %847 = vmatpush.msra.mxu0 0.0
    %848 = vmatpush.msra.mxu0 0.0
    %849 = vmatpush.msra.mxu0 0.0
    %850 = vmatpush.msra.mxu0 0.0
    %851 = vmatpush.msra.mxu0 0.0
    %v852 = vand.u32 %v289, 4294901760
    %853 = vmatpush.msra.mxu0 %v852
    %v854 = vand.u32 %v288, 4294901760
    %855 = vmatpush.msra.mxu0 %v854
    %v856 = vand.u32 %v287, 4294901760
    %857 = vmatpush.msra.mxu0 %v856
    %v858 = vand.u32 %v286, 4294901760
    %859 = vmatpush.msra.mxu0 %v858
    %v860 = vand.u32 %v298, 4294901760
    %v861 = vsub.f32 %v298, %v860
    %v862 = vand.u32 %v861, 4294901760
    %863 = vmatmul.f32.gmra.mxu0 %v862
    %v864 = vpop.f32.mrf.mxu0
    %v865 = vadd.f32 %v813, %v864
    %v866 = vand.u32 %v301, 4294901760
    %v867 = vsub.f32 %v301, %v866
    %v868 = vand.u32 %v867, 4294901760
    %869 = vmatmul.f32.gmra.mxu0 %v868
    %v870 = vpop.f32.mrf.mxu0
    %v871 = vadd.f32 %v818, %v870
    %v872 = vand.u32 %v304, 4294901760
    %v873 = vsub.f32 %v304, %v872
    %v874 = vand.u32 %v873, 4294901760
    %875 = vmatmul.f32.gmra.mxu0 %v874
    %v876 = vpop.f32.mrf.mxu0
    %v877 = vadd.f32 %v823, %v876
    %v878 = vand.u32 %v307, 4294901760
    %v879 = vsub.f32 %v307, %v878
    %v880 = vand.u32 %v879, 4294901760
    %881 = vmatmul.f32.gmra.mxu0 %v880
    %v882 = vpop.f32.mrf.mxu0
    %v883 = vadd.f32 %v828, %v882
    %v884 = vand.u32 %v310, 4294901760
    %v885 = vsub.f32 %v310, %v884
    %v886 = vand.u32 %v885, 4294901760
    %887 = vmatmul.f32.gmra.mxu0 %v886
    %v888 = vpop.f32.mrf.mxu0
    %v889 = vadd.f32 %v833, %v888
    %v890 = vand.u32 %v313, 4294901760
    %v891 = vsub.f32 %v313, %v890
    %v892 = vand.u32 %v891, 4294901760
    %893 = vmatmul.f32.gmra.mxu0 %v892
    %v894 = vpop.f32.mrf.mxu0
    %v895 = vadd.f32 %v838, %v894
    %896 = vdwg.mxu0
    %897 = vmatpush.msra.mxu0 0.0
    %898 = vmatpush.msra.mxu0 0.0
    %899 = vmatpush.msra.mxu0 0.0
    %900 = vmatpush.msra.mxu0 0.0
    %901 = vmatpush.msra.mxu0 0.0
    %902 = vmatpush.msra.mxu0 0.0
    %903 = vmatpush.msra.mxu0 0.0
    %904 = vmatpush.msra.mxu0 0.0
    %905 = vmatpush.msra.mxu0 0.0
    %906 = vmatpush.msra.mxu0 0.0
    %907 = vmatpush.msra.mxu0 0.0
    %908 = vmatpush.msra.mxu0 0.0
    %v909 = vand.u32 %v289, 4294901760
    %v910 = vsub.f32 %v289, %v909
    %v911 = vand.u32 %v910, 4294901760
    %912 = vmatpush.msra.mxu0 %v911
    %v913 = vand.u32 %v288, 4294901760
    %v914 = vsub.f32 %v288, %v913
    %v915 = vand.u32 %v914, 4294901760
    %916 = vmatpush.msra.mxu0 %v915
    %v917 = vand.u32 %v287, 4294901760
    %v918 = vsub.f32 %v287, %v917
    %v919 = vand.u32 %v918, 4294901760
    %920 = vmatpush.msra.mxu0 %v919
    %v921 = vand.u32 %v286, 4294901760
    %v922 = vsub.f32 %v286, %v921
    %v923 = vand.u32 %v922, 4294901760
    %924 = vmatpush.msra.mxu0 %v923
    %v925 = vand.u32 %v298, 4294901760
    %926 = vmatmul.f32.gmra.mxu0 %v925
    %v927 = vpop.f32.mrf.mxu0
    %v928 = vadd.f32 %v865, %v927
    %v929 = vand.u32 %v301, 4294901760
    %930 = vmatmul.f32.gmra.mxu0 %v929
    %v931 = vpop.f32.mrf.mxu0
    %v932 = vadd.f32 %v871, %v931
    %v933 = vand.u32 %v304, 4294901760
    %934 = vmatmul.f32.gmra.mxu0 %v933
    %v935 = vpop.f32.mrf.mxu0
    %v936 = vadd.f32 %v877, %v935
    %v937 = vand.u32 %v307, 4294901760
    %938 = vmatmul.f32.gmra.mxu0 %v937
    %v939 = vpop.f32.mrf.mxu0
    %v940 = vadd.f32 %v883, %v939
    %v941 = vand.u32 %v310, 4294901760
    %942 = vmatmul.f32.gmra.mxu0 %v941
    %v943 = vpop.f32.mrf.mxu0
    %v944 = vadd.f32 %v889, %v943
    %v945 = vand.u32 %v313, 4294901760
    %946 = vmatmul.f32.gmra.mxu0 %v945
    %v947 = vpop.f32.mrf.mxu0
    %v948 = vadd.f32 %v895, %v947
    %949 = vdwg.mxu0
    %950 = vmatpush.msra.mxu0 0.0
    %951 = vmatpush.msra.mxu0 0.0
    %952 = vmatpush.msra.mxu0 0.0
    %953 = vmatpush.msra.mxu0 0.0
    %954 = vmatpush.msra.mxu0 0.0
    %955 = vmatpush.msra.mxu0 0.0
    %956 = vmatpush.msra.mxu0 0.0
    %957 = vmatpush.msra.mxu0 0.0
    %958 = vmatpush.msra.mxu0 0.0
    %959 = vmatpush.msra.mxu0 0.0
    %960 = vmatpush.msra.mxu0 0.0
    %961 = vmatpush.msra.mxu0 0.0
    %v962 = vand.u32 %v289, 4294901760
    %963 = vmatpush.msra.mxu0 %v962
    %v964 = vand.u32 %v288, 4294901760
    %965 = vmatpush.msra.mxu0 %v964
    %v966 = vand.u32 %v287, 4294901760
    %967 = vmatpush.msra.mxu0 %v966
    %v968 = vand.u32 %v286, 4294901760
    %969 = vmatpush.msra.mxu0 %v968
    %v970 = vand.u32 %v298, 4294901760
    %971 = vmatmul.f32.gmra.mxu0 %v970
    %v972 = vpop.f32.mrf.mxu0
    %v973 = vadd.f32 %v928, %v972
    %v974 = vand.u32 %v301, 4294901760
    %975 = vmatmul.f32.gmra.mxu0 %v974
    %v976 = vpop.f32.mrf.mxu0
    %v977 = vadd.f32 %v932, %v976
    %v978 = vand.u32 %v304, 4294901760
    %979 = vmatmul.f32.gmra.mxu0 %v978
    %v980 = vpop.f32.mrf.mxu0
    %v981 = vadd.f32 %v936, %v980
    %v982 = vand.u32 %v307, 4294901760
    %983 = vmatmul.f32.gmra.mxu0 %v982
    %v984 = vpop.f32.mrf.mxu0
    %v985 = vadd.f32 %v940, %v984
    %v986 = vand.u32 %v310, 4294901760
    %987 = vmatmul.f32.gmra.mxu0 %v986
    %v988 = vpop.f32.mrf.mxu0
    %v989 = vadd.f32 %v944, %v988
    %v990 = vand.u32 %v313, 4294901760
    %991 = vmatmul.f32.gmra.mxu0 %v990
    %v992 = vpop.f32.mrf.mxu0
    %v993 = vadd.f32 %v948, %v992
    %994 = vdwg.mxu0
    %995 = vset.pattern.permute.xlu0 32
    %996 = vperm.xlu0 %995, %v290
    %v997 = vpop.permute.xlu0 %996
    %999 = vset.pattern.permute.xlu0 32
    %1000 = vperm.xlu0 %999, %v291
    %v1001 = vpop.permute.xlu0 %1000
    %1003 = vset.pattern.permute.xlu0 32
    %1004 = vperm.xlu0 %1003, %v292
    %v1005 = vpop.permute.xlu0 %1004
    %1007 = vset.pattern.permute.xlu0 32
    %1008 = vperm.xlu0 %1007, %v293
    %v1009 = vpop.permute.xlu0 %1008
    %1011 = vset.pattern.permute.xlu0 32
    %1012 = vperm.xlu0 %1011, %v294
    %v1013 = vpop.permute.xlu0 %1012
    %1015 = vset.pattern.permute.xlu0 32
    %1016 = vperm.xlu0 %1015, %v295
    %v1017 = vpop.permute.xlu0 %1016
    %v1019 = vadd.f32 %v633, %v997
    %v1020 = vadd.f32 %v637, %v1001
    %v1021 = vadd.f32 %v641, %v1005
    %v1022 = vadd.f32 %v645, %v1009
    %v1023 = vadd.f32 %v649, %v1013
    %v1024 = vadd.f32 %v653, %v1017
    %v1025 = vadd.f32 %v973, %v997
    %v1026 = vadd.f32 %v977, %v1001
    %v1027 = vadd.f32 %v981, %v1005
    %v1028 = vadd.f32 %v985, %v1009
    %v1029 = vadd.f32 %v989, %v1013
    %v1030 = vadd.f32 %v993, %v1017
    %v1031 = vld [vmem:[#allocation2] sm:$0xff]
    %v1032 = vld [vmem:[#allocation2 + $0x8] sm:$0xff]
    %v1033 = vld [vmem:[#allocation2 + $0x10] sm:$0xff]
    %v1034 = vld [vmem:[#allocation2 + $0x18] sm:$0xff]
    %v1035 = vld [vmem:[#allocation2 + $0x20] sm:$0xff]
    %v1036 = vld [vmem:[#allocation2 + $0x28] sm:$0xff]
    %v1037 = vld [vmem:[#allocation2 + $0x30] sm:$0xff]
    %v1038 = vld [vmem:[#allocation2 + $0x38] sm:$0xff]
    %vm1039 = vcmask 130048
    %v1041 = vsel %vm1039, %v1023, 0
    %v1044 = vsel %vm1039, %v1029, 0
    %1046 = vmatpush.msra.mxu0 0.0
    %1047 = vmatpush.msra.mxu0 0.0
    %1048 = vmatpush.msra.mxu0 0.0
    %1049 = vmatpush.msra.mxu0 0.0
    %1050 = vmatpush.msra.mxu0 0.0
    %1051 = vmatpush.msra.mxu0 0.0
    %1052 = vmatpush.msra.mxu0 0.0
    %1053 = vmatpush.msra.mxu0 0.0
    %1054 = vmatpush.msra.mxu0 0.0
    %1055 = vmatpush.msra.mxu0 0.0
    %1056 = vmatpush.msra.mxu0 0.0
    %1057 = vmatpush.msra.mxu0 0.0
    %1058 = vmatpush.msra.mxu0 0.0
    %1059 = vmatpush.msra.mxu0 0.0
    %v1060 = vand.u32 %v1033, 4294901760
    %1061 = vmatpush.msra.mxu0 %v1060
    %v1062 = vand.u32 %v1031, 4294901760
    %1063 = vmatpush.msra.mxu0 %v1062
    %v1064 = vand.u32 %v1041, 4294901760
    %v1065 = vsub.f32 %v1041, %v1064
    %v1066 = vand.u32 %v1065, 4294901760
    %v1067 = vsub.f32 %v1065, %v1066
    %v1068 = vand.u32 %v1067, 4294901760
    %1069 = vmatmul.f32.gmra.mxu0 %v1068
    %v1070 = vpop.f32.mrf.mxu0
    %v1071 = vadd.f32 0.0, %v1070
    %v1072 = vand.u32 %v1044, 4294901760
    %v1073 = vsub.f32 %v1044, %v1072
    %v1074 = vand.u32 %v1073, 4294901760
    %v1075 = vsub.f32 %v1073, %v1074
    %v1076 = vand.u32 %v1075, 4294901760
    %1077 = vmatmul.f32.gmra.mxu0 %v1076
    %v1078 = vpop.f32.mrf.mxu0
    %v1079 = vadd.f32 0.0, %v1078
    %1080 = vdwg.mxu0
    %1081 = vmatpush.msra.mxu0 0.0
    %1082 = vmatpush.msra.mxu0 0.0
    %1083 = vmatpush.msra.mxu0 0.0
    %1084 = vmatpush.msra.mxu0 0.0
    %1085 = vmatpush.msra.mxu0 0.0
    %1086 = vmatpush.msra.mxu0 0.0
    %1087 = vmatpush.msra.mxu0 0.0
    %1088 = vmatpush.msra.mxu0 0.0
    %1089 = vmatpush.msra.mxu0 0.0
    %1090 = vmatpush.msra.mxu0 0.0
    %1091 = vmatpush.msra.mxu0 0.0
    %1092 = vmatpush.msra.mxu0 0.0
    %1093 = vmatpush.msra.mxu0 0.0
    %1094 = vmatpush.msra.mxu0 0.0
    %v1095 = vand.u32 %v1033, 4294901760
    %v1096 = vsub.f32 %v1033, %v1095
    %v1097 = vand.u32 %v1096, 4294901760
    %v1098 = vsub.f32 %v1096, %v1097
    %v1099 = vand.u32 %v1098, 4294901760
    %1100 = vmatpush.msra.mxu0 %v1099
    %v1101 = vand.u32 %v1031, 4294901760
    %v1102 = vsub.f32 %v1031, %v1101
    %v1103 = vand.u32 %v1102, 4294901760
    %v1104 = vsub.f32 %v1102, %v1103
    %v1105 = vand.u32 %v1104, 4294901760
    %1106 = vmatpush.msra.mxu0 %v1105
    %v1107 = vand.u32 %v1041, 4294901760
    %1108 = vmatmul.f32.gmra.mxu0 %v1107
    %v1109 = vpop.f32.mrf.mxu0
    %v1110 = vadd.f32 %v1071, %v1109
    %v1111 = vand.u32 %v1044, 4294901760
    %1112 = vmatmul.f32.gmra.mxu0 %v1111
    %v1113 = vpop.f32.mrf.mxu0
    %v1114 = vadd.f32 %v1079, %v1113
    %1115 = vdwg.mxu0
    %1116 = vmatpush.msra.mxu0 0.0
    %1117 = vmatpush.msra.mxu0 0.0
    %1118 = vmatpush.msra.mxu0 0.0
    %1119 = vmatpush.msra.mxu0 0.0
    %1120 = vmatpush.msra.mxu0 0.0
    %1121 = vmatpush.msra.mxu0 0.0
    %1122 = vmatpush.msra.mxu0 0.0
    %1123 = vmatpush.msra.mxu0 0.0
    %1124 = vmatpush.msra.mxu0 0.0
    %1125 = vmatpush.msra.mxu0 0.0
    %1126 = vmatpush.msra.mxu0 0.0
    %1127 = vmatpush.msra.mxu0 0.0
    %1128 = vmatpush.msra.mxu0 0.0
    %1129 = vmatpush.msra.mxu0 0.0
    %v1130 = vand.u32 %v1033, 4294901760
    %v1131 = vsub.f32 %v1033, %v1130
    %1132 = vmatpush.msra.mxu0 %v1131
    %v1133 = vand.u32 %v1031, 4294901760
    %v1134 = vsub.f32 %v1031, %v1133
    %1135 = vmatpush.msra.mxu0 %v1134
    %v1136 = vand.u32 %v1041, 4294901760
    %v1137 = vsub.f32 %v1041, %v1136
    %1138 = vmatmul.f32.gmra.mxu0 %v1137
    %v1139 = vpop.f32.mrf.mxu0
    %v1140 = vadd.f32 %v1110, %v1139
    %v1141 = vand.u32 %v1044, 4294901760
    %v1142 = vsub.f32 %v1044, %v1141
    %1143 = vmatmul.f32.gmra.mxu0 %v1142
    %v1144 = vpop.f32.mrf.mxu0
    %v1145 = vadd.f32 %v1114, %v1144
    %1146 = vdwg.mxu0
    %1147 = vmatpush.msra.mxu0 0.0
    %1148 = vmatpush.msra.mxu0 0.0
    %1149 = vmatpush.msra.mxu0 0.0
    %1150 = vmatpush.msra.mxu0 0.0
    %1151 = vmatpush.msra.mxu0 0.0
    %1152 = vmatpush.msra.mxu0 0.0
    %1153 = vmatpush.msra.mxu0 0.0
    %1154 = vmatpush.msra.mxu0 0.0
    %1155 = vmatpush.msra.mxu0 0.0
    %1156 = vmatpush.msra.mxu0 0.0
    %1157 = vmatpush.msra.mxu0 0.0
    %1158 = vmatpush.msra.mxu0 0.0
    %1159 = vmatpush.msra.mxu0 0.0
    %1160 = vmatpush.msra.mxu0 0.0
    %v1161 = vand.u32 %v1033, 4294901760
    %1162 = vmatpush.msra.mxu0 %v1161
    %v1163 = vand.u32 %v1031, 4294901760
    %1164 = vmatpush.msra.mxu0 %v1163
    %v1165 = vand.u32 %v1041, 4294901760
    %v1166 = vsub.f32 %v1041, %v1165
    %v1167 = vand.u32 %v1166, 4294901760
    %1168 = vmatmul.f32.gmra.mxu0 %v1167
    %v1169 = vpop.f32.mrf.mxu0
    %v1170 = vadd.f32 %v1140, %v1169
    %v1171 = vand.u32 %v1044, 4294901760
    %v1172 = vsub.f32 %v1044, %v1171
    %v1173 = vand.u32 %v1172, 4294901760
    %1174 = vmatmul.f32.gmra.mxu0 %v1173
    %v1175 = vpop.f32.mrf.mxu0
    %v1176 = vadd.f32 %v1145, %v1175
    %1177 = vdwg.mxu0
    %1178 = vmatpush.msra.mxu0 0.0
    %1179 = vmatpush.msra.mxu0 0.0
    %1180 = vmatpush.msra.mxu0 0.0
    %1181 = vmatpush.msra.mxu0 0.0
    %1182 = vmatpush.msra.mxu0 0.0
    %1183 = vmatpush.msra.mxu0 0.0
    %1184 = vmatpush.msra.mxu0 0.0
    %1185 = vmatpush.msra.mxu0 0.0
    %1186 = vmatpush.msra.mxu0 0.0
    %1187 = vmatpush.msra.mxu0 0.0
    %1188 = vmatpush.msra.mxu0 0.0
    %1189 = vmatpush.msra.mxu0 0.0
    %1190 = vmatpush.msra.mxu0 0.0
    %1191 = vmatpush.msra.mxu0 0.0
    %v1192 = vand.u32 %v1033, 4294901760
    %v1193 = vsub.f32 %v1033, %v1192
    %v1194 = vand.u32 %v1193, 4294901760
    %1195 = vmatpush.msra.mxu0 %v1194
    %v1196 = vand.u32 %v1031, 4294901760
    %v1197 = vsub.f32 %v1031, %v1196
    %v1198 = vand.u32 %v1197, 4294901760
    %1199 = vmatpush.msra.mxu0 %v1198
    %v1200 = vand.u32 %v1041, 4294901760
    %1201 = vmatmul.f32.gmra.mxu0 %v1200
    %v1202 = vpop.f32.mrf.mxu0
    %v1203 = vadd.f32 %v1170, %v1202
    %v1204 = vand.u32 %v1044, 4294901760
    %1205 = vmatmul.f32.gmra.mxu0 %v1204
    %v1206 = vpop.f32.mrf.mxu0
    %v1207 = vadd.f32 %v1176, %v1206
    %1208 = vdwg.mxu0
    %1209 = vmatpush.msra.mxu0 0.0
    %1210 = vmatpush.msra.mxu0 0.0
    %1211 = vmatpush.msra.mxu0 0.0
    %1212 = vmatpush.msra.mxu0 0.0
    %1213 = vmatpush.msra.mxu0 0.0
    %1214 = vmatpush.msra.mxu0 0.0
    %1215 = vmatpush.msra.mxu0 0.0
    %1216 = vmatpush.msra.mxu0 0.0
    %1217 = vmatpush.msra.mxu0 0.0
    %1218 = vmatpush.msra.mxu0 0.0
    %1219 = vmatpush.msra.mxu0 0.0
    %1220 = vmatpush.msra.mxu0 0.0
    %1221 = vmatpush.msra.mxu0 0.0
    %1222 = vmatpush.msra.mxu0 0.0
    %v1223 = vand.u32 %v1033, 4294901760
    %1224 = vmatpush.msra.mxu0 %v1223
    %v1225 = vand.u32 %v1031, 4294901760
    %1226 = vmatpush.msra.mxu0 %v1225
    %v1227 = vand.u32 %v1041, 4294901760
    %1228 = vmatmul.f32.gmra.mxu0 %v1227
    %v1229 = vpop.f32.mrf.mxu0
    %v1230 = vadd.f32 %v1203, %v1229
    %v1231 = vand.u32 %v1044, 4294901760
    %1232 = vmatmul.f32.gmra.mxu0 %v1231
    %v1233 = vpop.f32.mrf.mxu0
    %v1234 = vadd.f32 %v1207, %v1233
    %1235 = vdwg.mxu0
    %1236 = vmatpush.msra.mxu0 0.0
    %1237 = vmatpush.msra.mxu0 0.0
    %1238 = vmatpush.msra.mxu0 0.0
    %1239 = vmatpush.msra.mxu0 0.0
    %1240 = vmatpush.msra.mxu0 0.0
    %1241 = vmatpush.msra.mxu0 0.0
    %1242 = vmatpush.msra.mxu0 0.0
    %1243 = vmatpush.msra.mxu0 0.0
    %1244 = vmatpush.msra.mxu0 0.0
    %1245 = vmatpush.msra.mxu0 0.0
    %1246 = vmatpush.msra.mxu0 0.0
    %1247 = vmatpush.msra.mxu0 0.0
    %1248 = vmatpush.msra.mxu0 0.0
    %1249 = vmatpush.msra.mxu0 0.0
    %v1250 = vand.u32 %v1034, 4294901760
    %1251 = vmatpush.msra.mxu0 %v1250
    %v1252 = vand.u32 %v1032, 4294901760
    %1253 = vmatpush.msra.mxu0 %v1252
    %v1254 = vand.u32 %v1041, 4294901760
    %v1255 = vsub.f32 %v1041, %v1254
    %v1256 = vand.u32 %v1255, 4294901760
    %v1257 = vsub.f32 %v1255, %v1256
    %v1258 = vand.u32 %v1257, 4294901760
    %1259 = vmatmul.f32.gmra.mxu0 %v1258
    %v1260 = vpop.f32.mrf.mxu0
    %v1261 = vadd.f32 0.0, %v1260
    %v1262 = vand.u32 %v1044, 4294901760
    %v1263 = vsub.f32 %v1044, %v1262
    %v1264 = vand.u32 %v1263, 4294901760
    %v1265 = vsub.f32 %v1263, %v1264
    %v1266 = vand.u32 %v1265, 4294901760
    %1267 = vmatmul.f32.gmra.mxu0 %v1266
    %v1268 = vpop.f32.mrf.mxu0
    %v1269 = vadd.f32 0.0, %v1268
    %1270 = vdwg.mxu0
    %1271 = vmatpush.msra.mxu0 0.0
    %1272 = vmatpush.msra.mxu0 0.0
    %1273 = vmatpush.msra.mxu0 0.0
    %1274 = vmatpush.msra.mxu0 0.0
    %1275 = vmatpush.msra.mxu0 0.0
    %1276 = vmatpush.msra.mxu0 0.0
    %1277 = vmatpush.msra.mxu0 0.0
    %1278 = vmatpush.msra.mxu0 0.0
    %1279 = vmatpush.msra.mxu0 0.0
    %1280 = vmatpush.msra.mxu0 0.0
    %1281 = vmatpush.msra.mxu0 0.0
    %1282 = vmatpush.msra.mxu0 0.0
    %1283 = vmatpush.msra.mxu0 0.0
    %1284 = vmatpush.msra.mxu0 0.0
    %v1285 = vand.u32 %v1034, 4294901760
    %v1286 = vsub.f32 %v1034, %v1285
    %v1287 = vand.u32 %v1286, 4294901760
    %v1288 = vsub.f32 %v1286, %v1287
    %v1289 = vand.u32 %v1288, 4294901760
    %1290 = vmatpush.msra.mxu0 %v1289
    %v1291 = vand.u32 %v1032, 4294901760
    %v1292 = vsub.f32 %v1032, %v1291
    %v1293 = vand.u32 %v1292, 4294901760
    %v1294 = vsub.f32 %v1292, %v1293
    %v1295 = vand.u32 %v1294, 4294901760
    %1296 = vmatpush.msra.mxu0 %v1295
    %v1297 = vand.u32 %v1041, 4294901760
    %1298 = vmatmul.f32.gmra.mxu0 %v1297
    %v1299 = vpop.f32.mrf.mxu0
    %v1300 = vadd.f32 %v1261, %v1299
    %v1301 = vand.u32 %v1044, 4294901760
    %1302 = vmatmul.f32.gmra.mxu0 %v1301
    %v1303 = vpop.f32.mrf.mxu0
    %v1304 = vadd.f32 %v1269, %v1303
    %1305 = vdwg.mxu0
    %1306 = vmatpush.msra.mxu0 0.0
    %1307 = vmatpush.msra.mxu0 0.0
    %1308 = vmatpush.msra.mxu0 0.0
    %1309 = vmatpush.msra.mxu0 0.0
    %1310 = vmatpush.msra.mxu0 0.0
    %1311 = vmatpush.msra.mxu0 0.0
    %1312 = vmatpush.msra.mxu0 0.0
    %1313 = vmatpush.msra.mxu0 0.0
    %1314 = vmatpush.msra.mxu0 0.0
    %1315 = vmatpush.msra.mxu0 0.0
    %1316 = vmatpush.msra.mxu0 0.0
    %1317 = vmatpush.msra.mxu0 0.0
    %1318 = vmatpush.msra.mxu0 0.0
    %1319 = vmatpush.msra.mxu0 0.0
    %v1320 = vand.u32 %v1034, 4294901760
    %v1321 = vsub.f32 %v1034, %v1320
    %1322 = vmatpush.msra.mxu0 %v1321
    %v1323 = vand.u32 %v1032, 4294901760
    %v1324 = vsub.f32 %v1032, %v1323
    %1325 = vmatpush.msra.mxu0 %v1324
    %v1326 = vand.u32 %v1041, 4294901760
    %v1327 = vsub.f32 %v1041, %v1326
    %1328 = vmatmul.f32.gmra.mxu0 %v1327
    %v1329 = vpop.f32.mrf.mxu0
    %v1330 = vadd.f32 %v1300, %v1329
    %v1331 = vand.u32 %v1044, 4294901760
    %v1332 = vsub.f32 %v1044, %v1331
    %1333 = vmatmul.f32.gmra.mxu0 %v1332
    %v1334 = vpop.f32.mrf.mxu0
    %v1335 = vadd.f32 %v1304, %v1334
    %1336 = vdwg.mxu0
    %1337 = vmatpush.msra.mxu0 0.0
    %1338 = vmatpush.msra.mxu0 0.0
    %1339 = vmatpush.msra.mxu0 0.0
    %1340 = vmatpush.msra.mxu0 0.0
    %1341 = vmatpush.msra.mxu0 0.0
    %1342 = vmatpush.msra.mxu0 0.0
    %1343 = vmatpush.msra.mxu0 0.0
    %1344 = vmatpush.msra.mxu0 0.0
    %1345 = vmatpush.msra.mxu0 0.0
    %1346 = vmatpush.msra.mxu0 0.0
    %1347 = vmatpush.msra.mxu0 0.0
    %1348 = vmatpush.msra.mxu0 0.0
    %1349 = vmatpush.msra.mxu0 0.0
    %1350 = vmatpush.msra.mxu0 0.0
    %v1351 = vand.u32 %v1034, 4294901760
    %1352 = vmatpush.msra.mxu0 %v1351
    %v1353 = vand.u32 %v1032, 4294901760
    %1354 = vmatpush.msra.mxu0 %v1353
    %v1355 = vand.u32 %v1041, 4294901760
    %v1356 = vsub.f32 %v1041, %v1355
    %v1357 = vand.u32 %v1356, 4294901760
    %1358 = vmatmul.f32.gmra.mxu0 %v1357
    %v1359 = vpop.f32.mrf.mxu0
    %v1360 = vadd.f32 %v1330, %v1359
    %v1361 = vand.u32 %v1044, 4294901760
    %v1362 = vsub.f32 %v1044, %v1361
    %v1363 = vand.u32 %v1362, 4294901760
    %1364 = vmatmul.f32.gmra.mxu0 %v1363
    %v1365 = vpop.f32.mrf.mxu0
    %v1366 = vadd.f32 %v1335, %v1365
    %1367 = vdwg.mxu0
    %1368 = vmatpush.msra.mxu0 0.0
    %1369 = vmatpush.msra.mxu0 0.0
    %1370 = vmatpush.msra.mxu0 0.0
    %1371 = vmatpush.msra.mxu0 0.0
    %1372 = vmatpush.msra.mxu0 0.0
    %1373 = vmatpush.msra.mxu0 0.0
    %1374 = vmatpush.msra.mxu0 0.0
    %1375 = vmatpush.msra.mxu0 0.0
    %1376 = vmatpush.msra.mxu0 0.0
    %1377 = vmatpush.msra.mxu0 0.0
    %1378 = vmatpush.msra.mxu0 0.0
    %1379 = vmatpush.msra.mxu0 0.0
    %1380 = vmatpush.msra.mxu0 0.0
    %1381 = vmatpush.msra.mxu0 0.0
    %v1382 = vand.u32 %v1034, 4294901760
    %v1383 = vsub.f32 %v1034, %v1382
    %v1384 = vand.u32 %v1383, 4294901760
    %1385 = vmatpush.msra.mxu0 %v1384
    %v1386 = vand.u32 %v1032, 4294901760
    %v1387 = vsub.f32 %v1032, %v1386
    %v1388 = vand.u32 %v1387, 4294901760
    %1389 = vmatpush.msra.mxu0 %v1388
    %v1390 = vand.u32 %v1041, 4294901760
    %1391 = vmatmul.f32.gmra.mxu0 %v1390
    %v1392 = vpop.f32.mrf.mxu0
    %v1393 = vadd.f32 %v1360, %v1392
    %v1394 = vand.u32 %v1044, 4294901760
    %1395 = vmatmul.f32.gmra.mxu0 %v1394
    %v1396 = vpop.f32.mrf.mxu0
    %v1397 = vadd.f32 %v1366, %v1396
    %1398 = vdwg.mxu0
    %1399 = vmatpush.msra.mxu0 0.0
    %1400 = vmatpush.msra.mxu0 0.0
    %1401 = vmatpush.msra.mxu0 0.0
    %1402 = vmatpush.msra.mxu0 0.0
    %1403 = vmatpush.msra.mxu0 0.0
    %1404 = vmatpush.msra.mxu0 0.0
    %1405 = vmatpush.msra.mxu0 0.0
    %1406 = vmatpush.msra.mxu0 0.0
    %1407 = vmatpush.msra.mxu0 0.0
    %1408 = vmatpush.msra.mxu0 0.0
    %1409 = vmatpush.msra.mxu0 0.0
    %1410 = vmatpush.msra.mxu0 0.0
    %1411 = vmatpush.msra.mxu0 0.0
    %1412 = vmatpush.msra.mxu0 0.0
    %v1413 = vand.u32 %v1034, 4294901760
    %1414 = vmatpush.msra.mxu0 %v1413
    %v1415 = vand.u32 %v1032, 4294901760
    %1416 = vmatpush.msra.mxu0 %v1415
    %v1417 = vand.u32 %v1041, 4294901760
    %1418 = vmatmul.f32.gmra.mxu0 %v1417
    %v1419 = vpop.f32.mrf.mxu0
    %v1420 = vadd.f32 %v1393, %v1419
    %v1421 = vand.u32 %v1044, 4294901760
    %1422 = vmatmul.f32.gmra.mxu0 %v1421
    %v1423 = vpop.f32.mrf.mxu0
    %v1424 = vadd.f32 %v1397, %v1423
    %1425 = vdwg.mxu0
    %v1427 = vsel %vm1039, %v1024, 0
    %v1430 = vsel %vm1039, %v1030, 0
    %1432 = vmatpush.msra.mxu0 0.0
    %1433 = vmatpush.msra.mxu0 0.0
    %1434 = vmatpush.msra.mxu0 0.0
    %1435 = vmatpush.msra.mxu0 0.0
    %1436 = vmatpush.msra.mxu0 0.0
    %1437 = vmatpush.msra.mxu0 0.0
    %1438 = vmatpush.msra.mxu0 0.0
    %1439 = vmatpush.msra.mxu0 0.0
    %1440 = vmatpush.msra.mxu0 0.0
    %1441 = vmatpush.msra.mxu0 0.0
    %1442 = vmatpush.msra.mxu0 0.0
    %1443 = vmatpush.msra.mxu0 0.0
    %1444 = vmatpush.msra.mxu0 0.0
    %1445 = vmatpush.msra.mxu0 0.0
    %v1446 = vand.u32 %v1037, 4294901760
    %1447 = vmatpush.msra.mxu0 %v1446
    %v1448 = vand.u32 %v1035, 4294901760
    %1449 = vmatpush.msra.mxu0 %v1448
    %v1450 = vand.u32 %v1427, 4294901760
    %v1451 = vsub.f32 %v1427, %v1450
    %v1452 = vand.u32 %v1451, 4294901760
    %v1453 = vsub.f32 %v1451, %v1452
    %v1454 = vand.u32 %v1453, 4294901760
    %1455 = vmatmul.f32.gmra.mxu0 %v1454
    %v1456 = vpop.f32.mrf.mxu0
    %v1457 = vadd.f32 0.0, %v1456
    %v1458 = vand.u32 %v1430, 4294901760
    %v1459 = vsub.f32 %v1430, %v1458
    %v1460 = vand.u32 %v1459, 4294901760
    %v1461 = vsub.f32 %v1459, %v1460
    %v1462 = vand.u32 %v1461, 4294901760
    %1463 = vmatmul.f32.gmra.mxu0 %v1462
    %v1464 = vpop.f32.mrf.mxu0
    %v1465 = vadd.f32 0.0, %v1464
    %1466 = vdwg.mxu0
    %1467 = vmatpush.msra.mxu0 0.0
    %1468 = vmatpush.msra.mxu0 0.0
    %1469 = vmatpush.msra.mxu0 0.0
    %1470 = vmatpush.msra.mxu0 0.0
    %1471 = vmatpush.msra.mxu0 0.0
    %1472 = vmatpush.msra.mxu0 0.0
    %1473 = vmatpush.msra.mxu0 0.0
    %1474 = vmatpush.msra.mxu0 0.0
    %1475 = vmatpush.msra.mxu0 0.0
    %1476 = vmatpush.msra.mxu0 0.0
    %1477 = vmatpush.msra.mxu0 0.0
    %1478 = vmatpush.msra.mxu0 0.0
    %1479 = vmatpush.msra.mxu0 0.0
    %1480 = vmatpush.msra.mxu0 0.0
    %v1481 = vand.u32 %v1037, 4294901760
    %v1482 = vsub.f32 %v1037, %v1481
    %v1483 = vand.u32 %v1482, 4294901760
    %v1484 = vsub.f32 %v1482, %v1483
    %v1485 = vand.u32 %v1484, 4294901760
    %1486 = vmatpush.msra.mxu0 %v1485
    %v1487 = vand.u32 %v1035, 4294901760
    %v1488 = vsub.f32 %v1035, %v1487
    %v1489 = vand.u32 %v1488, 4294901760
    %v1490 = vsub.f32 %v1488, %v1489
    %v1491 = vand.u32 %v1490, 4294901760
    %1492 = vmatpush.msra.mxu0 %v1491
    %v1493 = vand.u32 %v1427, 4294901760
    %1494 = vmatmul.f32.gmra.mxu0 %v1493
    %v1495 = vpop.f32.mrf.mxu0
    %v1496 = vadd.f32 %v1457, %v1495
    %v1497 = vand.u32 %v1430, 4294901760
    %1498 = vmatmul.f32.gmra.mxu0 %v1497
    %v1499 = vpop.f32.mrf.mxu0
    %v1500 = vadd.f32 %v1465, %v1499
    %1501 = vdwg.mxu0
    %1502 = vmatpush.msra.mxu0 0.0
    %1503 = vmatpush.msra.mxu0 0.0
    %1504 = vmatpush.msra.mxu0 0.0
    %1505 = vmatpush.msra.mxu0 0.0
    %1506 = vmatpush.msra.mxu0 0.0
    %1507 = vmatpush.msra.mxu0 0.0
    %1508 = vmatpush.msra.mxu0 0.0
    %1509 = vmatpush.msra.mxu0 0.0
    %1510 = vmatpush.msra.mxu0 0.0
    %1511 = vmatpush.msra.mxu0 0.0
    %1512 = vmatpush.msra.mxu0 0.0
    %1513 = vmatpush.msra.mxu0 0.0
    %1514 = vmatpush.msra.mxu0 0.0
    %1515 = vmatpush.msra.mxu0 0.0
    %v1516 = vand.u32 %v1037, 4294901760
    %v1517 = vsub.f32 %v1037, %v1516
    %1518 = vmatpush.msra.mxu0 %v1517
    %v1519 = vand.u32 %v1035, 4294901760
    %v1520 = vsub.f32 %v1035, %v1519
    %1521 = vmatpush.msra.mxu0 %v1520
    %v1522 = vand.u32 %v1427, 4294901760
    %v1523 = vsub.f32 %v1427, %v1522
    %1524 = vmatmul.f32.gmra.mxu0 %v1523
    %v1525 = vpop.f32.mrf.mxu0
    %v1526 = vadd.f32 %v1496, %v1525
    %v1527 = vand.u32 %v1430, 4294901760
    %v1528 = vsub.f32 %v1430, %v1527
    %1529 = vmatmul.f32.gmra.mxu0 %v1528
    %v1530 = vpop.f32.mrf.mxu0
    %v1531 = vadd.f32 %v1500, %v1530
    %1532 = vdwg.mxu0
    %1533 = vmatpush.msra.mxu0 0.0
    %1534 = vmatpush.msra.mxu0 0.0
    %1535 = vmatpush.msra.mxu0 0.0
    %1536 = vmatpush.msra.mxu0 0.0
    %1537 = vmatpush.msra.mxu0 0.0
    %1538 = vmatpush.msra.mxu0 0.0
    %1539 = vmatpush.msra.mxu0 0.0
    %1540 = vmatpush.msra.mxu0 0.0
    %1541 = vmatpush.msra.mxu0 0.0
    %1542 = vmatpush.msra.mxu0 0.0
    %1543 = vmatpush.msra.mxu0 0.0
    %1544 = vmatpush.msra.mxu0 0.0
    %1545 = vmatpush.msra.mxu0 0.0
    %1546 = vmatpush.msra.mxu0 0.0
    %v1547 = vand.u32 %v1037, 4294901760
    %1548 = vmatpush.msra.mxu0 %v1547
    %v1549 = vand.u32 %v1035, 4294901760
    %1550 = vmatpush.msra.mxu0 %v1549
    %v1551 = vand.u32 %v1427, 4294901760
    %v1552 = vsub.f32 %v1427, %v1551
    %v1553 = vand.u32 %v1552, 4294901760
    %1554 = vmatmul.f32.gmra.mxu0 %v1553
    %v1555 = vpop.f32.mrf.mxu0
    %v1556 = vadd.f32 %v1526, %v1555
    %v1557 = vand.u32 %v1430, 4294901760
    %v1558 = vsub.f32 %v1430, %v1557
    %v1559 = vand.u32 %v1558, 4294901760
    %1560 = vmatmul.f32.gmra.mxu0 %v1559
    %v1561 = vpop.f32.mrf.mxu0
    %v1562 = vadd.f32 %v1531, %v1561
    %1563 = vdwg.mxu0
    %1564 = vmatpush.msra.mxu0 0.0
    %1565 = vmatpush.msra.mxu0 0.0
    %1566 = vmatpush.msra.mxu0 0.0
    %1567 = vmatpush.msra.mxu0 0.0
    %1568 = vmatpush.msra.mxu0 0.0
    %1569 = vmatpush.msra.mxu0 0.0
    %1570 = vmatpush.msra.mxu0 0.0
    %1571 = vmatpush.msra.mxu0 0.0
    %1572 = vmatpush.msra.mxu0 0.0
    %1573 = vmatpush.msra.mxu0 0.0
    %1574 = vmatpush.msra.mxu0 0.0
    %1575 = vmatpush.msra.mxu0 0.0
    %1576 = vmatpush.msra.mxu0 0.0
    %1577 = vmatpush.msra.mxu0 0.0
    %v1578 = vand.u32 %v1037, 4294901760
    %v1579 = vsub.f32 %v1037, %v1578
    %v1580 = vand.u32 %v1579, 4294901760
    %1581 = vmatpush.msra.mxu0 %v1580
    %v1582 = vand.u32 %v1035, 4294901760
    %v1583 = vsub.f32 %v1035, %v1582
    %v1584 = vand.u32 %v1583, 4294901760
    %1585 = vmatpush.msra.mxu0 %v1584
    %v1586 = vand.u32 %v1427, 4294901760
    %1587 = vmatmul.f32.gmra.mxu0 %v1586
    %v1588 = vpop.f32.mrf.mxu0
    %v1589 = vadd.f32 %v1556, %v1588
    %v1590 = vand.u32 %v1430, 4294901760
    %1591 = vmatmul.f32.gmra.mxu0 %v1590
    %v1592 = vpop.f32.mrf.mxu0
    %v1593 = vadd.f32 %v1562, %v1592
    %1594 = vdwg.mxu0
    %1595 = vmatpush.msra.mxu0 0.0
    %1596 = vmatpush.msra.mxu0 0.0
    %1597 = vmatpush.msra.mxu0 0.0
    %1598 = vmatpush.msra.mxu0 0.0
    %1599 = vmatpush.msra.mxu0 0.0
    %1600 = vmatpush.msra.mxu0 0.0
    %1601 = vmatpush.msra.mxu0 0.0
    %1602 = vmatpush.msra.mxu0 0.0
    %1603 = vmatpush.msra.mxu0 0.0
    %1604 = vmatpush.msra.mxu0 0.0
    %1605 = vmatpush.msra.mxu0 0.0
    %1606 = vmatpush.msra.mxu0 0.0
    %1607 = vmatpush.msra.mxu0 0.0
    %1608 = vmatpush.msra.mxu0 0.0
    %v1609 = vand.u32 %v1037, 4294901760
    %1610 = vmatpush.msra.mxu0 %v1609
    %v1611 = vand.u32 %v1035, 4294901760
    %1612 = vmatpush.msra.mxu0 %v1611
    %v1613 = vand.u32 %v1427, 4294901760
    %1614 = vmatmul.f32.gmra.mxu0 %v1613
    %v1615 = vpop.f32.mrf.mxu0
    %v1616 = vadd.f32 %v1589, %v1615
    %v1617 = vand.u32 %v1430, 4294901760
    %1618 = vmatmul.f32.gmra.mxu0 %v1617
    %v1619 = vpop.f32.mrf.mxu0
    %v1620 = vadd.f32 %v1593, %v1619
    %1621 = vdwg.mxu0
    %1622 = vmatpush.msra.mxu0 0.0
    %1623 = vmatpush.msra.mxu0 0.0
    %1624 = vmatpush.msra.mxu0 0.0
    %1625 = vmatpush.msra.mxu0 0.0
    %1626 = vmatpush.msra.mxu0 0.0
    %1627 = vmatpush.msra.mxu0 0.0
    %1628 = vmatpush.msra.mxu0 0.0
    %1629 = vmatpush.msra.mxu0 0.0
    %1630 = vmatpush.msra.mxu0 0.0
    %1631 = vmatpush.msra.mxu0 0.0
    %1632 = vmatpush.msra.mxu0 0.0
    %1633 = vmatpush.msra.mxu0 0.0
    %1634 = vmatpush.msra.mxu0 0.0
    %1635 = vmatpush.msra.mxu0 0.0
    %v1636 = vand.u32 %v1038, 4294901760
    %1637 = vmatpush.msra.mxu0 %v1636
    %v1638 = vand.u32 %v1036, 4294901760
    %1639 = vmatpush.msra.mxu0 %v1638
    %v1640 = vand.u32 %v1427, 4294901760
    %v1641 = vsub.f32 %v1427, %v1640
    %v1642 = vand.u32 %v1641, 4294901760
    %v1643 = vsub.f32 %v1641, %v1642
    %v1644 = vand.u32 %v1643, 4294901760
    %1645 = vmatmul.f32.gmra.mxu0 %v1644
    %v1646 = vpop.f32.mrf.mxu0
    %v1647 = vadd.f32 0.0, %v1646
    %v1648 = vand.u32 %v1430, 4294901760
    %v1649 = vsub.f32 %v1430, %v1648
    %v1650 = vand.u32 %v1649, 4294901760
    %v1651 = vsub.f32 %v1649, %v1650
    %v1652 = vand.u32 %v1651, 4294901760
    %1653 = vmatmul.f32.gmra.mxu0 %v1652
    %v1654 = vpop.f32.mrf.mxu0
    %v1655 = vadd.f32 0.0, %v1654
    %1656 = vdwg.mxu0
    %1657 = vmatpush.msra.mxu0 0.0
    %1658 = vmatpush.msra.mxu0 0.0
    %1659 = vmatpush.msra.mxu0 0.0
    %1660 = vmatpush.msra.mxu0 0.0
    %1661 = vmatpush.msra.mxu0 0.0
    %1662 = vmatpush.msra.mxu0 0.0
    %1663 = vmatpush.msra.mxu0 0.0
    %1664 = vmatpush.msra.mxu0 0.0
    %1665 = vmatpush.msra.mxu0 0.0
    %1666 = vmatpush.msra.mxu0 0.0
    %1667 = vmatpush.msra.mxu0 0.0
    %1668 = vmatpush.msra.mxu0 0.0
    %1669 = vmatpush.msra.mxu0 0.0
    %1670 = vmatpush.msra.mxu0 0.0
    %v1671 = vand.u32 %v1038, 4294901760
    %v1672 = vsub.f32 %v1038, %v1671
    %v1673 = vand.u32 %v1672, 4294901760
    %v1674 = vsub.f32 %v1672, %v1673
    %v1675 = vand.u32 %v1674, 4294901760
    %1676 = vmatpush.msra.mxu0 %v1675
    %v1677 = vand.u32 %v1036, 4294901760
    %v1678 = vsub.f32 %v1036, %v1677
    %v1679 = vand.u32 %v1678, 4294901760
    %v1680 = vsub.f32 %v1678, %v1679
    %v1681 = vand.u32 %v1680, 4294901760
    %1682 = vmatpush.msra.mxu0 %v1681
    %v1683 = vand.u32 %v1427, 4294901760
    %1684 = vmatmul.f32.gmra.mxu0 %v1683
    %v1685 = vpop.f32.mrf.mxu0
    %v1686 = vadd.f32 %v1647, %v1685
    %v1687 = vand.u32 %v1430, 4294901760
    %1688 = vmatmul.f32.gmra.mxu0 %v1687
    %v1689 = vpop.f32.mrf.mxu0
    %v1690 = vadd.f32 %v1655, %v1689
    %1691 = vdwg.mxu0
    %1692 = vmatpush.msra.mxu0 0.0
    %1693 = vmatpush.msra.mxu0 0.0
    %1694 = vmatpush.msra.mxu0 0.0
    %1695 = vmatpush.msra.mxu0 0.0
    %1696 = vmatpush.msra.mxu0 0.0
    %1697 = vmatpush.msra.mxu0 0.0
    %1698 = vmatpush.msra.mxu0 0.0
    %1699 = vmatpush.msra.mxu0 0.0
    %1700 = vmatpush.msra.mxu0 0.0
    %1701 = vmatpush.msra.mxu0 0.0
    %1702 = vmatpush.msra.mxu0 0.0
    %1703 = vmatpush.msra.mxu0 0.0
    %1704 = vmatpush.msra.mxu0 0.0
    %1705 = vmatpush.msra.mxu0 0.0
    %v1706 = vand.u32 %v1038, 4294901760
    %v1707 = vsub.f32 %v1038, %v1706
    %1708 = vmatpush.msra.mxu0 %v1707
    %v1709 = vand.u32 %v1036, 4294901760
    %v1710 = vsub.f32 %v1036, %v1709
    %1711 = vmatpush.msra.mxu0 %v1710
    %v1712 = vand.u32 %v1427, 4294901760
    %v1713 = vsub.f32 %v1427, %v1712
    %1714 = vmatmul.f32.gmra.mxu0 %v1713
    %v1715 = vpop.f32.mrf.mxu0
    %v1716 = vadd.f32 %v1686, %v1715
    %v1717 = vand.u32 %v1430, 4294901760
    %v1718 = vsub.f32 %v1430, %v1717
    %1719 = vmatmul.f32.gmra.mxu0 %v1718
    %v1720 = vpop.f32.mrf.mxu0
    %v1721 = vadd.f32 %v1690, %v1720
    %1722 = vdwg.mxu0
    %1723 = vmatpush.msra.mxu0 0.0
    %1724 = vmatpush.msra.mxu0 0.0
    %1725 = vmatpush.msra.mxu0 0.0
    %1726 = vmatpush.msra.mxu0 0.0
    %1727 = vmatpush.msra.mxu0 0.0
    %1728 = vmatpush.msra.mxu0 0.0
    %1729 = vmatpush.msra.mxu0 0.0
    %1730 = vmatpush.msra.mxu0 0.0
    %1731 = vmatpush.msra.mxu0 0.0
    %1732 = vmatpush.msra.mxu0 0.0
    %1733 = vmatpush.msra.mxu0 0.0
    %1734 = vmatpush.msra.mxu0 0.0
    %1735 = vmatpush.msra.mxu0 0.0
    %1736 = vmatpush.msra.mxu0 0.0
    %v1737 = vand.u32 %v1038, 4294901760
    %1738 = vmatpush.msra.mxu0 %v1737
    %v1739 = vand.u32 %v1036, 4294901760
    %1740 = vmatpush.msra.mxu0 %v1739
    %v1741 = vand.u32 %v1427, 4294901760
    %v1742 = vsub.f32 %v1427, %v1741
    %v1743 = vand.u32 %v1742, 4294901760
    %1744 = vmatmul.f32.gmra.mxu0 %v1743
    %v1745 = vpop.f32.mrf.mxu0
    %v1746 = vadd.f32 %v1716, %v1745
    %v1747 = vand.u32 %v1430, 4294901760
    %v1748 = vsub.f32 %v1430, %v1747
    %v1749 = vand.u32 %v1748, 4294901760
    %1750 = vmatmul.f32.gmra.mxu0 %v1749
    %v1751 = vpop.f32.mrf.mxu0
    %v1752 = vadd.f32 %v1721, %v1751
    %1753 = vdwg.mxu0
    %1754 = vmatpush.msra.mxu0 0.0
    %1755 = vmatpush.msra.mxu0 0.0
    %1756 = vmatpush.msra.mxu0 0.0
    %1757 = vmatpush.msra.mxu0 0.0
    %1758 = vmatpush.msra.mxu0 0.0
    %1759 = vmatpush.msra.mxu0 0.0
    %1760 = vmatpush.msra.mxu0 0.0
    %1761 = vmatpush.msra.mxu0 0.0
    %1762 = vmatpush.msra.mxu0 0.0
    %1763 = vmatpush.msra.mxu0 0.0
    %1764 = vmatpush.msra.mxu0 0.0
    %1765 = vmatpush.msra.mxu0 0.0
    %1766 = vmatpush.msra.mxu0 0.0
    %1767 = vmatpush.msra.mxu0 0.0
    %v1768 = vand.u32 %v1038, 4294901760
    %v1769 = vsub.f32 %v1038, %v1768
    %v1770 = vand.u32 %v1769, 4294901760
    %1771 = vmatpush.msra.mxu0 %v1770
    %v1772 = vand.u32 %v1036, 4294901760
    %v1773 = vsub.f32 %v1036, %v1772
    %v1774 = vand.u32 %v1773, 4294901760
    %1775 = vmatpush.msra.mxu0 %v1774
    %v1776 = vand.u32 %v1427, 4294901760
    %1777 = vmatmul.f32.gmra.mxu0 %v1776
    %v1778 = vpop.f32.mrf.mxu0
    %v1779 = vadd.f32 %v1746, %v1778
    %v1780 = vand.u32 %v1430, 4294901760
    %1781 = vmatmul.f32.gmra.mxu0 %v1780
    %v1782 = vpop.f32.mrf.mxu0
    %v1783 = vadd.f32 %v1752, %v1782
    %1784 = vdwg.mxu0
    %1785 = vmatpush.msra.mxu0 0.0
    %1786 = vmatpush.msra.mxu0 0.0
    %1787 = vmatpush.msra.mxu0 0.0
    %1788 = vmatpush.msra.mxu0 0.0
    %1789 = vmatpush.msra.mxu0 0.0
    %1790 = vmatpush.msra.mxu0 0.0
    %1791 = vmatpush.msra.mxu0 0.0
    %1792 = vmatpush.msra.mxu0 0.0
    %1793 = vmatpush.msra.mxu0 0.0
    %1794 = vmatpush.msra.mxu0 0.0
    %1795 = vmatpush.msra.mxu0 0.0
    %1796 = vmatpush.msra.mxu0 0.0
    %1797 = vmatpush.msra.mxu0 0.0
    %1798 = vmatpush.msra.mxu0 0.0
    %v1799 = vand.u32 %v1038, 4294901760
    %1800 = vmatpush.msra.mxu0 %v1799
    %v1801 = vand.u32 %v1036, 4294901760
    %1802 = vmatpush.msra.mxu0 %v1801
    %v1803 = vand.u32 %v1427, 4294901760
    %1804 = vmatmul.f32.gmra.mxu0 %v1803
    %v1805 = vpop.f32.mrf.mxu0
    %v1806 = vadd.f32 %v1779, %v1805
    %v1807 = vand.u32 %v1430, 4294901760
    %1808 = vmatmul.f32.gmra.mxu0 %v1807
    %v1809 = vpop.f32.mrf.mxu0
    %v1810 = vadd.f32 %v1783, %v1809
    %1811 = vdwg.mxu0
    %v1812 = vsub.f32 %v1230, %v1616
    %v1813 = vsub.f32 %v1420, %v1806
    %v1814 = vsub.f32 %v1234, %v1620
    %v1815 = vsub.f32 %v1424, %v1810
    %v1816 = vtanh.pop %v1812
    %v1817 = vtanh.pop %v1813
    %v1818 = vtanh.pop %v1814
    %v1819 = vtanh.pop %v1815
    %1822 = vrot.lane.b32.xlu0 %v1816, 112
    %v1823 = vpop.permute.xlu0 %1822
    %1824 = vrot.lane.b32.xlu0 %v1818, 112
    %v1825 = vpop.permute.xlu0 %1824
    %v1828 = vadd.f32 %v1816, %v1823
    %v1829 = vadd.f32 %v1818, %v1825
    %1830 = vrot.lane.b32.xlu0 %v1816, 96
    %v1831 = vpop.permute.xlu0 %1830
    %1832 = vrot.lane.b32.xlu0 %v1818, 96
    %v1833 = vpop.permute.xlu0 %1832
    %v1836 = vadd.f32 %v1828, %v1831
    %v1837 = vadd.f32 %v1829, %v1833
    %1838 = vrot.lane.b32.xlu0 %v1816, 80
    %v1839 = vpop.permute.xlu0 %1838
    %1840 = vrot.lane.b32.xlu0 %v1818, 80
    %v1841 = vpop.permute.xlu0 %1840
    %v1844 = vadd.f32 %v1836, %v1839
    %v1845 = vadd.f32 %v1837, %v1841
    %1846 = vrot.lane.b32.xlu0 %v1816, 64
    %v1847 = vpop.permute.xlu0 %1846
    %1848 = vrot.lane.b32.xlu0 %v1818, 64
    %v1849 = vpop.permute.xlu0 %1848
    %v1852 = vadd.f32 %v1844, %v1847
    %v1853 = vadd.f32 %v1845, %v1849
    %1854 = vrot.lane.b32.xlu0 %v1816, 48
    %v1855 = vpop.permute.xlu0 %1854
    %1856 = vrot.lane.b32.xlu0 %v1818, 48
    %v1857 = vpop.permute.xlu0 %1856
    %v1860 = vadd.f32 %v1852, %v1855
    %v1861 = vadd.f32 %v1853, %v1857
    %1862 = vrot.lane.b32.xlu0 %v1816, 32
    %v1863 = vpop.permute.xlu0 %1862
    %1864 = vrot.lane.b32.xlu0 %v1818, 32
    %v1865 = vpop.permute.xlu0 %1864
    %v1868 = vadd.f32 %v1860, %v1863
    %v1869 = vadd.f32 %v1861, %v1865
    %1870 = vrot.lane.b32.xlu0 %v1816, 16
    %v1871 = vpop.permute.xlu0 %1870
    %1872 = vrot.lane.b32.xlu0 %v1818, 16
    %v1873 = vpop.permute.xlu0 %1872
    %v1876 = vadd.f32 %v1868, %v1871
    %v1877 = vadd.f32 %v1869, %v1873
    %v1878 = vadd.f32 %v1876, %v1817
    %v1879 = vadd.f32 %v1877, %v1819
    %1882 = vrot.lane.b32.xlu0 %v1817, 112
    %v1883 = vpop.permute.xlu0 %1882
    %1884 = vrot.lane.b32.xlu0 %v1819, 112
    %v1885 = vpop.permute.xlu0 %1884
    %v1888 = vadd.f32 %v1878, %v1883
    %v1889 = vadd.f32 %v1879, %v1885
    %1890 = vrot.lane.b32.xlu0 %v1817, 96
    %v1891 = vpop.permute.xlu0 %1890
    %1892 = vrot.lane.b32.xlu0 %v1819, 96
    %v1893 = vpop.permute.xlu0 %1892
    %v1896 = vadd.f32 %v1888, %v1891
    %v1897 = vadd.f32 %v1889, %v1893
    %1898 = vrot.lane.b32.xlu0 %v1817, 80
    %v1899 = vpop.permute.xlu0 %1898
    %1900 = vrot.lane.b32.xlu0 %v1819, 80
    %v1901 = vpop.permute.xlu0 %1900
    %v1904 = vadd.f32 %v1896, %v1899
    %v1905 = vadd.f32 %v1897, %v1901
    %1906 = vrot.lane.b32.xlu0 %v1817, 64
    %v1907 = vpop.permute.xlu0 %1906
    %1908 = vrot.lane.b32.xlu0 %v1819, 64
    %v1909 = vpop.permute.xlu0 %1908
    %v1912 = vadd.f32 %v1904, %v1907
    %v1913 = vadd.f32 %v1905, %v1909
    %1914 = vrot.lane.b32.xlu0 %v1817, 48
    %v1915 = vpop.permute.xlu0 %1914
    %1916 = vrot.lane.b32.xlu0 %v1819, 48
    %v1917 = vpop.permute.xlu0 %1916
    %v1920 = vadd.f32 %v1912, %v1915
    %v1921 = vadd.f32 %v1913, %v1917
    %1922 = vrot.lane.b32.xlu0 %v1817, 32
    %v1923 = vpop.permute.xlu0 %1922
    %1924 = vrot.lane.b32.xlu0 %v1819, 32
    %v1925 = vpop.permute.xlu0 %1924
    %v1928 = vadd.f32 %v1920, %v1923
    %v1929 = vadd.f32 %v1921, %v1925
    %1930 = vrot.lane.b32.xlu0 %v1817, 16
    %v1931 = vpop.permute.xlu0 %1930
    %1932 = vrot.lane.b32.xlu0 %v1819, 16
    %v1933 = vpop.permute.xlu0 %1932
    %v1936 = vadd.f32 %v1928, %v1931
    %v1937 = vadd.f32 %v1929, %v1933
    %v1938 = vld [vmem:[#allocation5] sm:$0xff]
    %v1939 = vld [vmem:[#allocation5 + $0x8] sm:$0xff]
    %v1940 = vld [vmem:[#allocation5 + $0x10] sm:$0xff]
    %v1941 = vld [vmem:[#allocation5 + $0x18] sm:$0xff]
    %v1942 = vld [vmem:[#allocation5 + $0x20] sm:$0x1]
    %1944 = vset.pattern.permute.xlu0 32
    %1945 = vperm.xlu0 %1944, %v1938
    %v1946 = vpop.permute.xlu0 %1945
    %1949 = vset.pattern.permute.xlu0 32
    %1950 = vperm.xlu0 %1949, %v1939
    %v1951 = vpop.permute.xlu0 %1950
    %1954 = vset.pattern.permute.xlu0 32
    %1955 = vperm.xlu0 %1954, %v1940
    %v1956 = vpop.permute.xlu0 %1955
    %1959 = vset.pattern.permute.xlu0 32
    %1960 = vperm.xlu0 %1959, %v1941
    %v1961 = vpop.permute.xlu0 %1960
    %v1963 = vperm.slane %v1936, 0
    %v1964 = vperm.slane %v1937, 0
    %v1965 = vmul.f32 %v1946, %v1963
    %v1966 = vmul.f32 %v1951, %v1963
    %v1967 = vmul.f32 %v1956, %v1963
    %v1968 = vmul.f32 %v1961, %v1963
    %v1969 = vmul.f32 %v1946, %v1964
    %v1970 = vmul.f32 %v1951, %v1964
    %v1971 = vmul.f32 %v1956, %v1964
    %v1972 = vmul.f32 %v1961, %v1964
    %1973 = vset.pattern.permute.xlu0 33
    %1974 = vperm.xlu0 %1973, %v1938
    %v1975 = vpop.permute.xlu0 %1974
    %1977 = vset.pattern.permute.xlu0 33
    %1978 = vperm.xlu0 %1977, %v1939
    %v1979 = vpop.permute.xlu0 %1978
    %1981 = vset.pattern.permute.xlu0 33
    %1982 = vperm.xlu0 %1981, %v1940
    %v1983 = vpop.permute.xlu0 %1982
    %1985 = vset.pattern.permute.xlu0 33
    %1986 = vperm.xlu0 %1985, %v1941
    %v1987 = vpop.permute.xlu0 %1986
    %v1989 = vperm.slane %v1936, 1
    %v1990 = vperm.slane %v1937, 1
    %v1991 = vmul.f32 %v1975, %v1989
    %v1992 = vmul.f32 %v1979, %v1989
    %v1993 = vmul.f32 %v1983, %v1989
    %v1994 = vmul.f32 %v1987, %v1989
    %v1995 = vmul.f32 %v1975, %v1990
    %v1996 = vmul.f32 %v1979, %v1990
    %v1997 = vmul.f32 %v1983, %v1990
    %v1998 = vmul.f32 %v1987, %v1990
    %v1999 = vadd.f32 %v1965, %v1991
    %v2000 = vadd.f32 %v1966, %v1992
    %v2001 = vadd.f32 %v1967, %v1993
    %v2002 = vadd.f32 %v1968, %v1994
    %v2003 = vadd.f32 %v1969, %v1995
    %v2004 = vadd.f32 %v1970, %v1996
    %v2005 = vadd.f32 %v1971, %v1997
    %v2006 = vadd.f32 %v1972, %v1998
    %2007 = vset.pattern.permute.xlu0 34
    %2008 = vperm.xlu0 %2007, %v1938
    %v2009 = vpop.permute.xlu0 %2008
    %2011 = vset.pattern.permute.xlu0 34
    %2012 = vperm.xlu0 %2011, %v1939
    %v2013 = vpop.permute.xlu0 %2012
    %2015 = vset.pattern.permute.xlu0 34
    %2016 = vperm.xlu0 %2015, %v1940
    %v2017 = vpop.permute.xlu0 %2016
    %2019 = vset.pattern.permute.xlu0 34
    %2020 = vperm.xlu0 %2019, %v1941
    %v2021 = vpop.permute.xlu0 %2020
    %v2023 = vperm.slane %v1936, 2
    %v2024 = vperm.slane %v1937, 2
    %v2025 = vmul.f32 %v2009, %v2023
    %v2026 = vmul.f32 %v2013, %v2023
    %v2027 = vmul.f32 %v2017, %v2023
    %v2028 = vmul.f32 %v2021, %v2023
    %v2029 = vmul.f32 %v2009, %v2024
    %v2030 = vmul.f32 %v2013, %v2024
    %v2031 = vmul.f32 %v2017, %v2024
    %v2032 = vmul.f32 %v2021, %v2024
    %v2033 = vadd.f32 %v1999, %v2025
    %v2034 = vadd.f32 %v2000, %v2026
    %v2035 = vadd.f32 %v2001, %v2027
    %v2036 = vadd.f32 %v2002, %v2028
    %v2037 = vadd.f32 %v2003, %v2029
    %v2038 = vadd.f32 %v2004, %v2030
    %v2039 = vadd.f32 %v2005, %v2031
    %v2040 = vadd.f32 %v2006, %v2032
    %2041 = vset.pattern.permute.xlu0 35
    %2042 = vperm.xlu0 %2041, %v1938
    %v2043 = vpop.permute.xlu0 %2042
    %2045 = vset.pattern.permute.xlu0 35
    %2046 = vperm.xlu0 %2045, %v1939
    %v2047 = vpop.permute.xlu0 %2046
    %2049 = vset.pattern.permute.xlu0 35
    %2050 = vperm.xlu0 %2049, %v1940
    %v2051 = vpop.permute.xlu0 %2050
    %2053 = vset.pattern.permute.xlu0 35
    %2054 = vperm.xlu0 %2053, %v1941
    %v2055 = vpop.permute.xlu0 %2054
    %v2057 = vperm.slane %v1936, 3
    %v2058 = vperm.slane %v1937, 3
    %v2059 = vmul.f32 %v2043, %v2057
    %v2060 = vmul.f32 %v2047, %v2057
    %v2061 = vmul.f32 %v2051, %v2057
    %v2062 = vmul.f32 %v2055, %v2057
    %v2063 = vmul.f32 %v2043, %v2058
    %v2064 = vmul.f32 %v2047, %v2058
    %v2065 = vmul.f32 %v2051, %v2058
    %v2066 = vmul.f32 %v2055, %v2058
    %v2067 = vadd.f32 %v2033, %v2059
    %v2068 = vadd.f32 %v2034, %v2060
    %v2069 = vadd.f32 %v2035, %v2061
    %v2070 = vadd.f32 %v2036, %v2062
    %v2071 = vadd.f32 %v2037, %v2063
    %v2072 = vadd.f32 %v2038, %v2064
    %v2073 = vadd.f32 %v2039, %v2065
    %v2074 = vadd.f32 %v2040, %v2066
    %2075 = vset.pattern.permute.xlu0 36
    %2076 = vperm.xlu0 %2075, %v1938
    %v2077 = vpop.permute.xlu0 %2076
    %2079 = vset.pattern.permute.xlu0 36
    %2080 = vperm.xlu0 %2079, %v1939
    %v2081 = vpop.permute.xlu0 %2080
    %2083 = vset.pattern.permute.xlu0 36
    %2084 = vperm.xlu0 %2083, %v1940
    %v2085 = vpop.permute.xlu0 %2084
    %2087 = vset.pattern.permute.xlu0 36
    %2088 = vperm.xlu0 %2087, %v1941
    %v2089 = vpop.permute.xlu0 %2088
    %v2091 = vadd.f32 %v2067, %v2077
    %v2092 = vadd.f32 %v2068, %v2081
    %v2093 = vadd.f32 %v2069, %v2085
    %v2094 = vadd.f32 %v2070, %v2089
    %v2095 = vadd.f32 %v2071, %v2077
    %v2096 = vadd.f32 %v2072, %v2081
    %v2097 = vadd.f32 %v2073, %v2085
    %v2098 = vadd.f32 %v2074, %v2089
    %v2099 = vmul.f32 %v2091, %v1019
    %v2100 = vmul.f32 %v2092, %v1020
    %v2101 = vmul.f32 %v2093, %v1021
    %v2102 = vmul.f32 %v2094, %v1022
    %v2103 = vmul.f32 %v2095, %v1025
    %v2104 = vmul.f32 %v2096, %v1026
    %v2105 = vmul.f32 %v2097, %v1027
    %v2106 = vmul.f32 %v2098, %v1028
    %v2107 = vsel %vm1039, %v2099, 0.0
    %2108 = vadd.xlane.f32.xlu0 %v2107
    %v2109 = vpop.xlane.xlu0 %2108
    %v2110 = vsel %vm1039, %v2100, 0.0
    %2111 = vadd.xlane.f32.xlu0 %v2110
    %v2112 = vpop.xlane.xlu0 %2111
    %v2113 = vsel %vm1039, %v2101, 0.0
    %2114 = vadd.xlane.f32.xlu0 %v2113
    %v2115 = vpop.xlane.xlu0 %2114
    %v2116 = vsel %vm1039, %v2102, 0.0
    %2117 = vadd.xlane.f32.xlu0 %v2116
    %v2118 = vpop.xlane.xlu0 %2117
    %v2119 = vsel %vm1039, %v2103, 0.0
    %2120 = vadd.xlane.f32.xlu0 %v2119
    %v2121 = vpop.xlane.xlu0 %2120
    %v2122 = vsel %vm1039, %v2104, 0.0
    %2123 = vadd.xlane.f32.xlu0 %v2122
    %v2124 = vpop.xlane.xlu0 %2123
    %v2125 = vsel %vm1039, %v2105, 0.0
    %2126 = vadd.xlane.f32.xlu0 %v2125
    %v2127 = vpop.xlane.xlu0 %2126
    %v2128 = vsel %vm1039, %v2106, 0.0
    %2129 = vadd.xlane.f32.xlu0 %v2128
    %v2130 = vpop.xlane.xlu0 %2129
    %v2131 = vperm.slane %v1942, 0
    %v2140 = vlaneseq
    %v2141 = vand.u32 %v2140, 127
    %v2142 = vperm.slane %v2109, %v2141
    %v2143 = vadd.s32 %v2141, 4294967288
    %v2144 = vperm.slane %v2112, %v2143
    %vm2145 = vcmask 130112
    %v2146 = vsel %vm2145, %v2144, %v2142
    %v2147 = vadd.s32 %v2141, 4294967280
    %v2148 = vperm.slane %v2115, %v2147
    %vm2149 = vcmask 195712
    %v2150 = vsel %vm2149, %v2148, %v2146
    %v2151 = vadd.s32 %v2141, 4294967272
    %v2152 = vperm.slane %v2118, %v2151
    %vm2153 = vcmask 261312
    %v2154 = vsel %vm2153, %v2152, %v2150
    %v2155 = vperm.slane %v2121, %v2141
    %v2156 = vperm.slane %v2124, %v2143
    %v2157 = vsel %vm2145, %v2156, %v2155
    %v2158 = vperm.slane %v2127, %v2147
    %v2159 = vsel %vm2149, %v2158, %v2157
    %v2160 = vperm.slane %v2130, %v2151
    %v2161 = vsel %vm2153, %v2160, %v2159
    %vm2162 = vcmask 1041409
    %v2163 = vsel %vm2162, %v2161, %v2154
    %v2164 = vsel %vm296, %v2163, 0
    %2166 = vmatpush.msra.mxu0 0.0
    %2167 = vmatpush.msra.mxu0 0.0
    %2168 = vmatpush.msra.mxu0 0.0
    %2169 = vmatpush.msra.mxu0 0.0
    %2170 = vmatpush.msra.mxu0 0.0
    %2171 = vmatpush.msra.mxu0 0.0
    %2172 = vmatpush.msra.mxu0 0.0
    %2173 = vmatpush.msra.mxu0 0.0
    %2174 = vmatpush.msra.mxu0 0.0
    %2175 = vmatpush.msra.mxu0 0.0
    %2176 = vmatpush.msra.mxu0 0.0
    %2177 = vmatpush.msra.mxu0 0.0
    %v2178 = vand.u32 %v1941, 4294901760
    %2179 = vmatpush.msra.mxu0 %v2178
    %v2180 = vand.u32 %v1940, 4294901760
    %2181 = vmatpush.msra.mxu0 %v2180
    %v2182 = vand.u32 %v1939, 4294901760
    %2183 = vmatpush.msra.mxu0 %v2182
    %v2184 = vand.u32 %v1938, 4294901760
    %2185 = vmatpush.msra.mxu0 %v2184
    %v2186 = vand.u32 %v2164, 4294901760
    %v2187 = vsub.f32 %v2164, %v2186
    %v2188 = vand.u32 %v2187, 4294901760
    %v2189 = vsub.f32 %v2187, %v2188
    %v2190 = vand.u32 %v2189, 4294901760
    %2191 = vmatmul.f32.gmra.mxu0 %v2190
    %v2192 = vpop.f32.mrf.mxu0
    %v2193 = vadd.f32 %v2131, %v2192
    %2194 = vdwg.mxu0
    %2195 = vmatpush.msra.mxu0 0.0
    %2196 = vmatpush.msra.mxu0 0.0
    %2197 = vmatpush.msra.mxu0 0.0
    %2198 = vmatpush.msra.mxu0 0.0
    %2199 = vmatpush.msra.mxu0 0.0
    %2200 = vmatpush.msra.mxu0 0.0
    %2201 = vmatpush.msra.mxu0 0.0
    %2202 = vmatpush.msra.mxu0 0.0
    %2203 = vmatpush.msra.mxu0 0.0
    %2204 = vmatpush.msra.mxu0 0.0
    %2205 = vmatpush.msra.mxu0 0.0
    %2206 = vmatpush.msra.mxu0 0.0
    %v2207 = vand.u32 %v1941, 4294901760
    %v2208 = vsub.f32 %v1941, %v2207
    %v2209 = vand.u32 %v2208, 4294901760
    %v2210 = vsub.f32 %v2208, %v2209
    %v2211 = vand.u32 %v2210, 4294901760
    %2212 = vmatpush.msra.mxu0 %v2211
    %v2213 = vand.u32 %v1940, 4294901760
    %v2214 = vsub.f32 %v1940, %v2213
    %v2215 = vand.u32 %v2214, 4294901760
    %v2216 = vsub.f32 %v2214, %v2215
    %v2217 = vand.u32 %v2216, 4294901760
    %2218 = vmatpush.msra.mxu0 %v2217
    %v2219 = vand.u32 %v1939, 4294901760
    %v2220 = vsub.f32 %v1939, %v2219
    %v2221 = vand.u32 %v2220, 4294901760
    %v2222 = vsub.f32 %v2220, %v2221
    %v2223 = vand.u32 %v2222, 4294901760
    %2224 = vmatpush.msra.mxu0 %v2223
    %v2225 = vand.u32 %v1938, 4294901760
    %v2226 = vsub.f32 %v1938, %v2225
    %v2227 = vand.u32 %v2226, 4294901760
    %v2228 = vsub.f32 %v2226, %v2227
    %v2229 = vand.u32 %v2228, 4294901760
    %2230 = vmatpush.msra.mxu0 %v2229
    %v2231 = vand.u32 %v2164, 4294901760
    %2232 = vmatmul.f32.gmra.mxu0 %v2231
    %v2233 = vpop.f32.mrf.mxu0
    %v2234 = vadd.f32 %v2193, %v2233
    %2235 = vdwg.mxu0
    %2236 = vmatpush.msra.mxu0 0.0
    %2237 = vmatpush.msra.mxu0 0.0
    %2238 = vmatpush.msra.mxu0 0.0
    %2239 = vmatpush.msra.mxu0 0.0
    %2240 = vmatpush.msra.mxu0 0.0
    %2241 = vmatpush.msra.mxu0 0.0
    %2242 = vmatpush.msra.mxu0 0.0
    %2243 = vmatpush.msra.mxu0 0.0
    %2244 = vmatpush.msra.mxu0 0.0
    %2245 = vmatpush.msra.mxu0 0.0
    %2246 = vmatpush.msra.mxu0 0.0
    %2247 = vmatpush.msra.mxu0 0.0
    %v2248 = vand.u32 %v1941, 4294901760
    %v2249 = vsub.f32 %v1941, %v2248
    %2250 = vmatpush.msra.mxu0 %v2249
    %v2251 = vand.u32 %v1940, 4294901760
    %v2252 = vsub.f32 %v1940, %v2251
    %2253 = vmatpush.msra.mxu0 %v2252
    %v2254 = vand.u32 %v1939, 4294901760
    %v2255 = vsub.f32 %v1939, %v2254
    %2256 = vmatpush.msra.mxu0 %v2255
    %v2257 = vand.u32 %v1938, 4294901760
    %v2258 = vsub.f32 %v1938, %v2257
    %2259 = vmatpush.msra.mxu0 %v2258
    %v2260 = vand.u32 %v2164, 4294901760
    %v2261 = vsub.f32 %v2164, %v2260
    %2262 = vmatmul.f32.gmra.mxu0 %v2261
    %v2263 = vpop.f32.mrf.mxu0
    %v2264 = vadd.f32 %v2234, %v2263
    %2265 = vdwg.mxu0
    %2266 = vmatpush.msra.mxu0 0.0
    %2267 = vmatpush.msra.mxu0 0.0
    %2268 = vmatpush.msra.mxu0 0.0
    %2269 = vmatpush.msra.mxu0 0.0
    %2270 = vmatpush.msra.mxu0 0.0
    %2271 = vmatpush.msra.mxu0 0.0
    %2272 = vmatpush.msra.mxu0 0.0
    %2273 = vmatpush.msra.mxu0 0.0
    %2274 = vmatpush.msra.mxu0 0.0
    %2275 = vmatpush.msra.mxu0 0.0
    %2276 = vmatpush.msra.mxu0 0.0
    %2277 = vmatpush.msra.mxu0 0.0
    %v2278 = vand.u32 %v1941, 4294901760
    %2279 = vmatpush.msra.mxu0 %v2278
    %v2280 = vand.u32 %v1940, 4294901760
    %2281 = vmatpush.msra.mxu0 %v2280
    %v2282 = vand.u32 %v1939, 4294901760
    %2283 = vmatpush.msra.mxu0 %v2282
    %v2284 = vand.u32 %v1938, 4294901760
    %2285 = vmatpush.msra.mxu0 %v2284
    %v2286 = vand.u32 %v2164, 4294901760
    %v2287 = vsub.f32 %v2164, %v2286
    %v2288 = vand.u32 %v2287, 4294901760
    %2289 = vmatmul.f32.gmra.mxu0 %v2288
    %v2290 = vpop.f32.mrf.mxu0
    %v2291 = vadd.f32 %v2264, %v2290
    %2292 = vdwg.mxu0
    %2293 = vmatpush.msra.mxu0 0.0
    %2294 = vmatpush.msra.mxu0 0.0
    %2295 = vmatpush.msra.mxu0 0.0
    %2296 = vmatpush.msra.mxu0 0.0
    %2297 = vmatpush.msra.mxu0 0.0
    %2298 = vmatpush.msra.mxu0 0.0
    %2299 = vmatpush.msra.mxu0 0.0
    %2300 = vmatpush.msra.mxu0 0.0
    %2301 = vmatpush.msra.mxu0 0.0
    %2302 = vmatpush.msra.mxu0 0.0
    %2303 = vmatpush.msra.mxu0 0.0
    %2304 = vmatpush.msra.mxu0 0.0
    %v2305 = vand.u32 %v1941, 4294901760
    %v2306 = vsub.f32 %v1941, %v2305
    %v2307 = vand.u32 %v2306, 4294901760
    %2308 = vmatpush.msra.mxu0 %v2307
    %v2309 = vand.u32 %v1940, 4294901760
    %v2310 = vsub.f32 %v1940, %v2309
    %v2311 = vand.u32 %v2310, 4294901760
    %2312 = vmatpush.msra.mxu0 %v2311
    %v2313 = vand.u32 %v1939, 4294901760
    %v2314 = vsub.f32 %v1939, %v2313
    %v2315 = vand.u32 %v2314, 4294901760
    %2316 = vmatpush.msra.mxu0 %v2315
    %v2317 = vand.u32 %v1938, 4294901760
    %v2318 = vsub.f32 %v1938, %v2317
    %v2319 = vand.u32 %v2318, 4294901760
    %2320 = vmatpush.msra.mxu0 %v2319
    %v2321 = vand.u32 %v2164, 4294901760
    %2322 = vmatmul.f32.gmra.mxu0 %v2321
    %v2323 = vpop.f32.mrf.mxu0
    %v2324 = vadd.f32 %v2291, %v2323
    %2325 = vdwg.mxu0
    %2326 = vmatpush.msra.mxu0 0.0
    %2327 = vmatpush.msra.mxu0 0.0
    %2328 = vmatpush.msra.mxu0 0.0
    %2329 = vmatpush.msra.mxu0 0.0
    %2330 = vmatpush.msra.mxu0 0.0
    %2331 = vmatpush.msra.mxu0 0.0
    %2332 = vmatpush.msra.mxu0 0.0
    %2333 = vmatpush.msra.mxu0 0.0
    %2334 = vmatpush.msra.mxu0 0.0
    %2335 = vmatpush.msra.mxu0 0.0
    %2336 = vmatpush.msra.mxu0 0.0
    %2337 = vmatpush.msra.mxu0 0.0
    %v2338 = vand.u32 %v1941, 4294901760
    %2339 = vmatpush.msra.mxu0 %v2338
    %v2340 = vand.u32 %v1940, 4294901760
    %2341 = vmatpush.msra.mxu0 %v2340
    %v2342 = vand.u32 %v1939, 4294901760
    %2343 = vmatpush.msra.mxu0 %v2342
    %v2344 = vand.u32 %v1938, 4294901760
    %2345 = vmatpush.msra.mxu0 %v2344
    %v2346 = vand.u32 %v2164, 4294901760
    %2347 = vmatmul.f32.gmra.mxu0 %v2346
    %v2348 = vpop.f32.mrf.mxu0
    %v2349 = vadd.f32 %v2324, %v2348
    %2350 = vdwg.mxu0
    %v2351 = vmax.f32 %v2349, 0.0
    %vm2352 = vcmask 254976
    %2353 = vst.msk [vmem:[#allocation7] sm:$0x3] %vm2352, %v2351
    // Predicated region
    $region26: #{tpu_custom_call.1} parent=1 // pred_check
      _
    $region27: #{tpu_custom_call.1} parent=1 // pred_check_branch
      %2355 = sbr.rel (0) target = $region29
    $region28: #{tpu_custom_call.1} parent=1 // pred_region
      %2357 = vsyncadd [#allocation4], 0
      %s2359 = sshll.u32 [#allocation7], 4
      %s2360 = int_to_ptr.vmem [resolvable:$true] %s2359
      %s2361 = sshll.u32 %s4, 4
      %s2362 = int_to_ptr.hbm [resolvable:$true] %s2361
      %2364 = dma.vmem_to_hbm [thread:$0]  %s2360, 32, %s2362, [#allocation4]
    $region29: #{tpu_custom_call.1} parent=1 // pred_fallthru
      _
    // Predicated region
    $region30: #{tpu_custom_call.1} parent=1 // pred_check
      _
    $region31: #{tpu_custom_call.1} parent=1 // pred_check_branch
      %2366 = sbr.rel (0) target = $region33
    $region32: #{tpu_custom_call.1} parent=1 // pred_region
      %2368 = dma.done [#allocation4], 32
    $region33: #{tpu_custom_call.1} parent=1 // pred_fallthru
      _
    %2369 = vsyncpa [#allocation3], 1
    %2370 = vsyncpa [#allocation6], 1
    %2371 = vsyncpa [#allocation4], 1

</llo_original>
